<compile_context>
chip_gen: v7x
topology: tpu7x:2x2x1
jax: 0.10.0
libtpu: 0.0.40
codegen_flags: <defaults>
</compile_context>

<pallas_src>
import math

import jax
import jax.numpy as jnp
from jax import lax
from jax.experimental import pallas as pl
from jax.experimental.pallas import tpu as pltpu

# ----------------------- problem configuration (small) -----------------------
N = 4            # time steps
D = 4            # spatial dimension d
T = 1.0
LAMB = 0.3
TS = 32          # tensor_size
HID = 2 * TS     # FNN hidden width (= 64)
DT = T / N
BATCH = 8
SAMPLE = 16      # Monte-Carlo sample size
OUT_LANES = 128  # lane-dense output slab width

# Consolidated-network geometry.
HID_R = 2 * HID                        # group R hidden lanes: [u | jumpy] = 128
HID_C = N * HID                        # group C hidden lanes: 4 jumpx blocks = 256
ROWS_R = BATCH + SAMPLE + N * BATCH    # 8 + 16 + 32 = 56
U_COL = TS                             # column of u output in group-R L3 output

# Packed-slab layouts.
WBIG_ROWS = HID_R + HID_C + HID_C      # [W2R|W3R] ; W2C ; [W3C|0]  -> 640
WSMALL_ROWS = 32
ACT_ROWS, ACT_COLS = 64, 32


def _f_driver(u):
    # equation.f
    return u


# --------------------------------- kernel -----------------------------------
def bsdeg_kernel(wbig_ref, wsmall_ref, act_ref, out_ref):
    f32, bf16 = jnp.float32, jnp.bfloat16

    # ---- packed weights (static VMEM windows) --------------------------------
    w1R = wsmall_ref[0:2 * D, 0:HID_R]              # (8, 128) block-diag L1 [u|jumpy]
    bias = wsmall_ref[8:16, 0:HID_C]                # (8, 256) bias rows
    w1C = wsmall_ref[16:32, 0:HID_C]                # (16, 256) block-diag L1 jumpx[0..3]
    b1R = bias[0:1, 0:HID_R]
    b2R = bias[1:2, 0:HID_R]
    b3R = bias[2:3, 0:HID_R]
    b3C = bias[3:4, 0:N * TS]
    b1C = bias[4:5, :]
    b2C = bias[5:6, :]

    w2R = wbig_ref[0:HID_R, 0:HID_R]                          # (128,128) bf16
    w3R = wbig_ref[0:HID_R, HID_R:2 * HID_R]                  # (128,128) bf16
    w2C = wbig_ref[HID_R:HID_R + HID_C, 0:HID_C]              # (256,256) bf16
    w3C = wbig_ref[HID_R + HID_C:HID_R + 2 * HID_C, 0:N * TS]  # (256,128) bf16

    # ---- activations ----------------------------------------------------------
    actR = act_ref[0:ROWS_R, 0:2 * D]               # (56, 8)
    actC = act_ref[ROWS_R:ROWS_R + BATCH, 0:N * D]  # (8, 16)
    x_T = act_ref[0:BATCH, D:2 * D]                 # (8, 4) terminal state (for g only)

    # ---- group R: u(x) + jumpy([mc_js ; Js(all steps)]), row-batched ---------
    # Layer 1 (K = 8) as VPU broadcast-FMAs; keep f32.
    hR = b1R + actR[:, 0:1] * w1R[0:1, :]
    for k in range(1, 2 * D):
        hR = hR + actR[:, k:k + 1] * w1R[k:k + 1, :]
    hR = jnp.maximum(hR, 0.0)
    hR = jnp.maximum(
        jnp.dot(hR.astype(bf16), w2R, preferred_element_type=f32) + b2R, 0.0)
    outR = jnp.dot(hR.astype(bf16), w3R, preferred_element_type=f32) + b3R  # (56,128)

    u = outR[0:BATCH, U_COL:U_COL + 1]              # (8, 1)  u(x)
    jy = outR[BATCH:ROWS_R, 0:TS]                   # (48, 32) jumpy outputs
    yin = actR[BATCH:ROWS_R, D:2 * D]               # (48, 4)  jumpy inputs
    # tanh(||y||): forward-safe at 0; use sqrt(x+eps) if a VJP is ever added.
    wgt = jnp.tanh(jnp.sqrt(jnp.sum(yin * yin, axis=1, keepdims=True)))
    jyw = jy * wgt                                  # (48, 32)
    # mc_mean * lamb * dt, folded into the kernel.
    mc_term = jnp.mean(jyw[0:SAMPLE], axis=0, keepdims=True) * (LAMB * DT)  # (1,32)

    # ---- group C: jumpx[0..3] column-batched (block-diagonal, hidden 256) ----
    hC = b1C + actC[:, 0:1] * w1C[0:1, :]
    for k in range(1, N * D):
        hC = hC + actC[:, k:k + 1] * w1C[k:k + 1, :]
    hC = jnp.maximum(hC, 0.0)
    hC = jnp.maximum(
        jnp.dot(hC.astype(bf16), w2C, preferred_element_type=f32) + b2C, 0.0)
    jx = jnp.dot(hC.astype(bf16), w3C, preferred_element_type=f32) + b3C    # (8,128)

    # ---- per-step totals + serial u recursion (kept serial for general f) ----
    for i in range(N):
        jyw_i = jyw[SAMPLE + i * BATCH: SAMPLE + (i + 1) * BATCH, :]        # (8,32)
        jx_i = jx[:, i * TS:(i + 1) * TS]                                   # (8,32)
        total = jnp.sum(jx_i * (jyw_i - mc_term), axis=1, keepdims=True)    # (8,1)
        u = u - _f_driver(u) * DT + total

    # terminal condition g(X_T) = sum(x^2)
    g = jnp.sum(x_T * x_T, axis=1, keepdims=True)                           # (8,1)

    # single lane-dense unmasked store: col 0 = u, col 1 = g_term
    col = lax.broadcasted_iota(jnp.int32, (BATCH, OUT_LANES), 1)
    slab = jnp.where(col == 0, u, jnp.where(col == 1, g, 0.0))
    out_ref[...] = slab.astype(out_ref.dtype)


# ------------------------- parameter init & packing ---------------------------
def init_mlp(key, d_in, hidden, d_out):
    ks = jax.random.split(key, 6)
    s1, s2, s3 = 1.0 / math.sqrt(d_in), 1.0 / math.sqrt(hidden), 1.0 / math.sqrt(hidden)
    w1 = jax.random.normal(ks[0], (d_in, hidden), jnp.float32) * s1
    b1 = jax.random.normal(ks[1], (1, hidden), jnp.float32) * 0.01
    w2 = jax.random.normal(ks[2], (hidden, hidden), jnp.float32) * s2
    b2 = jax.random.normal(ks[3], (1, hidden), jnp.float32) * 0.01
    w3 = jax.random.normal(ks[4], (hidden, d_out), jnp.float32) * s3
    b3 = jax.random.normal(ks[5], (1, d_out), jnp.float32) * 0.01
    return (w1, b1, w2, b2, w3, b3)


def init_jumpx(key):
    per_step = [init_mlp(k, D, HID, TS) for k in jax.random.split(key, N)]
    return tuple(jnp.stack([p[j] for p in per_step]) for j in range(6))


def pack_params(params):
    """Build the two weight slabs once (init time, not on the per-call path)."""
    uw1, ub1, uw2, ub2, uw3, ub3 = params["u"]
    yw1, yb1, yw2, yb2, yw3, yb3 = params["jumpy"]
    xw1, xb1, xw2, xb2, xw3, xb3 = params["jumpx"]   # each stacked over N

    # group R (u ⊕ jumpy), block-diagonal over the hidden axis
    W1R = jnp.zeros((2 * D, HID_R), jnp.float32)
    W1R = W1R.at[0:D, 0:HID].set(uw1).at[D:2 * D, HID:2 * HID].set(yw1)
    b1R = jnp.concatenate([ub1, yb1], axis=1)
    W2R = jnp.zeros((HID_R, HID_R), jnp.float32)
    W2R = W2R.at[0:HID, 0:HID].set(uw2).at[HID:, HID:].set(yw2)
    b2R = jnp.concatenate([ub2, yb2], axis=1)
    W3R = jnp.zeros((HID_R, HID_R), jnp.float32)
    W3R = W3R.at[HID:, 0:TS].set(yw3)                 # jumpy out -> cols 0..31
    W3R = W3R.at[0:HID, U_COL:U_COL + 1].set(uw3)     # u out     -> col 32
    b3R = jnp.zeros((1, HID_R), jnp.float32)
    b3R = b3R.at[:, 0:TS].set(yb3).at[:, U_COL:U_COL + 1].set(ub3)

    # group C (jumpx[0..3]), block-diagonal over the hidden axis
    W1C = jnp.zeros((N * D, HID_C), jnp.float32)
    W2C = jnp.zeros((HID_C, HID_C), jnp.float32)
    W3C = jnp.zeros((HID_C, N * TS), jnp.float32)
    for i in range(N):
        W1C = W1C.at[i * D:(i + 1) * D, i * HID:(i + 1) * HID].set(xw1[i])
        W2C = W2C.at[i * HID:(i + 1) * HID, i * HID:(i + 1) * HID].set(xw2[i])
        W3C = W3C.at[i * HID:(i + 1) * HID, i * TS:(i + 1) * TS].set(xw3[i])
    b1C = xb1.reshape(1, N * HID)
    b2C = xb2.reshape(1, N * HID)
    b3C = xb3.reshape(1, N * TS)

    # bf16 matmul-weight slab: rows [0:128)=[W2R|W3R], [128:384)=W2C, [384:640)=[W3C|0]
    wbig = jnp.zeros((WBIG_ROWS, HID_C), jnp.bfloat16)
    wbig = wbig.at[0:HID_R, 0:HID_R].set(W2R.astype(jnp.bfloat16))
    wbig = wbig.at[0:HID_R, HID_R:2 * HID_R].set(W3R.astype(jnp.bfloat16))
    wbig = wbig.at[HID_R:HID_R + HID_C, :].set(W2C.astype(jnp.bfloat16))
    wbig = wbig.at[HID_R + HID_C:, 0:N * TS].set(W3C.astype(jnp.bfloat16))

    # f32 slab: layer-1 weights (VPU FMAs) + all biases
    wsmall = jnp.zeros((WSMALL_ROWS, HID_C), jnp.float32)
    wsmall = wsmall.at[0:2 * D, 0:HID_R].set(W1R)
    wsmall = wsmall.at[8:9, 0:HID_R].set(b1R)
    wsmall = wsmall.at[9:10, 0:HID_R].set(b2R)
    wsmall = wsmall.at[10:11, 0:HID_R].set(b3R)
    wsmall = wsmall.at[11:12, 0:N * TS].set(b3C)
    wsmall = wsmall.at[12:13, :].set(b1C)
    wsmall = wsmall.at[13:14, :].set(b2C)
    wsmall = wsmall.at[16:32, :].set(W1C)
    return {"wbig": wbig, "wsmall": wsmall}


# -------------------------------- wrapper ------------------------------------
_VMEM = pl.BlockSpec(memory_space=pltpu.MemorySpace.VMEM)


def pack_activations(x, Xt, Js, mc_js):
    """One f32 activation slab: group-R rows (u + jumpy inputs) then group-C rows."""
    acts = jnp.zeros((ACT_ROWS, ACT_COLS), jnp.float32)
    acts = acts.at[0:BATCH, 0:D].set(x)                                      # u input
    acts = acts.at[0:BATCH, D:2 * D].set(Xt[N])                              # X_T (g only)
    acts = acts.at[BATCH:BATCH + SAMPLE, D:2 * D].set(mc_js)                 # MC jump samples
    acts = acts.at[BATCH + SAMPLE:ROWS_R, D:2 * D].set(Js.reshape(N * BATCH, D))
    xstk = jnp.transpose(Xt[0:N], (1, 0, 2)).reshape(BATCH, N * D)           # jumpx inputs
    acts = acts.at[ROWS_R:ROWS_R + BATCH, 0:N * D].set(xstk)
    return acts


@jax.jit
def bsdeg_forward(x, Xt, Js, mc_js, packed):
    acts = pack_activations(x, Xt, Js, mc_js)
    out = pl.pallas_call(
        bsdeg_kernel,
        out_shape=jax.ShapeDtypeStruct((BATCH, OUT_LANES), jnp.float32),
        in_specs=[_VMEM, _VMEM, _VMEM],   # weights first -> their DMA is issued first
        out_specs=_VMEM,
    )(packed["wbig"], packed["wsmall"], acts)
    return out[:, 0:1], out[:, 1:2]


# ------------------------------ SDE simulation --------------------------------
def simulate_sde(x, key):
    """Euler-Maruyama + compound-Poisson jumps.  Returns Xt (N+1,B,D), Js (N,B,D)."""
    keys = jax.random.split(key, N)

    def body(X, k):
        kw, kj, kp = jax.random.split(k, 3)
        dW = jax.random.normal(kw, X.shape, jnp.float32) * jnp.sqrt(DT)
        J = jax.random.normal(kj, X.shape, jnp.float32) * 0.1
        dNp = (jax.random.uniform(kp, (X.shape[0], 1)) < LAMB * DT).astype(jnp.float32)
        Xn = X + 0.1 * X * DT + 0.2 * dW + J * dNp
        return Xn, (Xn, J * dNp)

    _, (Xs, Js) = lax.scan(body, x, keys)
    Xt = jnp.concatenate([x[None], Xs], axis=0)
    return Xt, Js


# ------------------------------ pure-JAX reference ----------------------------
def _mlp3_ref(x, p):
    w1, b1, w2, b2, w3, b3 = p
    h = jnp.maximum(x @ w1 + b1, 0.0)
    h = jnp.maximum(h @ w2 + b2, 0.0)
    return h @ w3 + b3


def forward_ref(x, Xt, Js, mc_js, params):
    u = _mlp3_ref(x, params["u"])
    jy_mc = _mlp3_ref(mc_js, params["jumpy"])
    mc_mean = jnp.mean(
        jy_mc * jnp.tanh(jnp.linalg.norm(mc_js, axis=1, keepdims=True)),
        axis=0, keepdims=True)
    mc_term = mc_mean * LAMB * DT
    for i in range(N):
        p_i = tuple(p[i] for p in params["jumpx"])
        jx = _mlp3_ref(Xt[i], p_i)
        jy = _mlp3_ref(Js[i], params["jumpy"])
        w = jnp.tanh(jnp.linalg.norm(Js[i], axis=1, keepdims=True))
        total = jnp.sum(jx * (jy * w - mc_term), axis=1, keepdims=True)
        u = u - _f_driver(u) * DT + total
    return u, jnp.sum(Xt[N] ** 2, axis=1, keepdims=True)


# ----------------------------------- main --------------------------------------
if __name__ == "__main__":
    key = jax.random.PRNGKey(0)
    kx, ksde, kmc, ku, kjy, kjx = jax.random.split(key, 6)

    x = jax.random.normal(kx, (BATCH, D), jnp.float32)
    Xt, Js = simulate_sde(x, ksde)                                  # SDE paths (glue)
    mc_js = jax.random.normal(kmc, (SAMPLE, D), jnp.float32) * 0.1  # equation.jump(...)

    params = {
        "u": init_mlp(ku, D, HID, 1),
        "jumpy": init_mlp(kjy, D, HID, TS),
        "jumpx": init_jumpx(kjx),
    }
    packed = pack_params(params)    # built once; per-call path only packs activations

    u, g_term = bsdeg_forward(x, Xt, Js, mc_js, packed)
    u, g_term = jax.block_until_ready((u, g_term))

    u_ref, g_ref = forward_ref(x, Xt, Js, mc_js, params)
    assert u.shape == (BATCH, 1) and g_term.shape == (BATCH, 1)
    # u uses bf16 MXU operands (f32 accumulate) -> compare to the f32 reference
    # with a bf16-appropriate tolerance; g is pure f32 elementwise.
    assert jnp.allclose(u, u_ref, atol=2e-2, rtol=2e-2)
    assert jnp.allclose(g_term, g_ref, atol=1e-3, rtol=1e-3)

    print("KERNEL_OK")
</pallas_src>

<mosaic_0001>
module attributes {stable_mosaic.version = 11 : i64} {
  func.func @bsdeg_kernel(%arg0: memref<640x256xbf16, #tpu.memory_space<vmem>>, %arg1: memref<32x256xf32, #tpu.memory_space<vmem>>, %arg2: memref<64x32xf32, #tpu.memory_space<vmem>>, %arg3: memref<8x128xf32, #tpu.memory_space<vmem>>) attributes {dimension_semantics = [], scalar_prefetch = 0 : i64, scratch_operands = 0 : i64, tpu.core_type = #tpu.core_type<tc>} {
    %c0 = arith.constant 0 : index
    %c0_0 = arith.constant 0 : index
    %0 = vector.load %arg1[%c0, %c0_0] : memref<32x256xf32, #tpu.memory_space<vmem>>, vector<8x128xf32>
    %c8 = arith.constant 8 : index
    %c0_1 = arith.constant 0 : index
    %1 = vector.load %arg1[%c8, %c0_1] : memref<32x256xf32, #tpu.memory_space<vmem>>, vector<8x256xf32>
    %c16 = arith.constant 16 : index
    %c0_2 = arith.constant 0 : index
    %2 = vector.load %arg1[%c16, %c0_2] : memref<32x256xf32, #tpu.memory_space<vmem>>, vector<16x256xf32>
    %3 = vector.extract_strided_slice %1 {offsets = [0, 0], sizes = [1, 128], strides = [1, 1]} : vector<8x256xf32> to vector<1x128xf32>
    %4 = vector.extract_strided_slice %1 {offsets = [1, 0], sizes = [1, 128], strides = [1, 1]} : vector<8x256xf32> to vector<1x128xf32>
    %5 = vector.extract_strided_slice %1 {offsets = [2, 0], sizes = [1, 128], strides = [1, 1]} : vector<8x256xf32> to vector<1x128xf32>
    %6 = vector.extract_strided_slice %1 {offsets = [3, 0], sizes = [1, 128], strides = [1, 1]} : vector<8x256xf32> to vector<1x128xf32>
    %7 = vector.extract_strided_slice %1 {offsets = [4, 0], sizes = [1, 256], strides = [1, 1]} : vector<8x256xf32> to vector<1x256xf32>
    %8 = vector.extract_strided_slice %1 {offsets = [5, 0], sizes = [1, 256], strides = [1, 1]} : vector<8x256xf32> to vector<1x256xf32>
    %c0_3 = arith.constant 0 : index
    %c0_4 = arith.constant 0 : index
    %9 = vector.load %arg0[%c0_3, %c0_4] : memref<640x256xbf16, #tpu.memory_space<vmem>>, vector<128x128xbf16>
    %c0_5 = arith.constant 0 : index
    %c128 = arith.constant 128 : index
    %10 = vector.load %arg0[%c0_5, %c128] : memref<640x256xbf16, #tpu.memory_space<vmem>>, vector<128x128xbf16>
    %c128_6 = arith.constant 128 : index
    %c0_7 = arith.constant 0 : index
    %11 = vector.load %arg0[%c128_6, %c0_7] : memref<640x256xbf16, #tpu.memory_space<vmem>>, vector<256x256xbf16>
    %c384 = arith.constant 384 : index
    %c0_8 = arith.constant 0 : index
    %12 = vector.load %arg0[%c384, %c0_8] : memref<640x256xbf16, #tpu.memory_space<vmem>>, vector<256x128xbf16>
    %c0_9 = arith.constant 0 : index
    %c0_10 = arith.constant 0 : index
    %13 = vector.load %arg2[%c0_9, %c0_10] : memref<64x32xf32, #tpu.memory_space<vmem>>, vector<56x8xf32>
    %c56 = arith.constant 56 : index
    %c0_11 = arith.constant 0 : index
    %14 = vector.load %arg2[%c56, %c0_11] : memref<64x32xf32, #tpu.memory_space<vmem>>, vector<8x16xf32>
    %c0_12 = arith.constant 0 : index
    %c4 = arith.constant 4 : index
    %15 = vector.load %arg2[%c0_12, %c4] : memref<64x32xf32, #tpu.memory_space<vmem>>, vector<8x4xf32>
    %16 = vector.extract_strided_slice %13 {offsets = [0, 0], sizes = [56, 1], strides = [1, 1]} : vector<56x8xf32> to vector<56x1xf32>
    %17 = vector.extract_strided_slice %0 {offsets = [0, 0], sizes = [1, 128], strides = [1, 1]} : vector<8x128xf32> to vector<1x128xf32>
    %18 = vector.broadcast %16 : vector<56x1xf32> to vector<56x128xf32>
    %19 = vector.broadcast %17 : vector<1x128xf32> to vector<56x128xf32>
    %20 = arith.mulf %18, %19 : vector<56x128xf32>
    %21 = vector.broadcast %3 : vector<1x128xf32> to vector<56x128xf32>
    %22 = arith.addf %21, %20 : vector<56x128xf32>
    %23 = vector.extract_strided_slice %13 {offsets = [0, 1], sizes = [56, 1], strides = [1, 1]} : vector<56x8xf32> to vector<56x1xf32>
    %24 = vector.extract_strided_slice %0 {offsets = [1, 0], sizes = [1, 128], strides = [1, 1]} : vector<8x128xf32> to vector<1x128xf32>
    %25 = vector.broadcast %23 : vector<56x1xf32> to vector<56x128xf32>
    %26 = vector.broadcast %24 : vector<1x128xf32> to vector<56x128xf32>
    %27 = arith.mulf %25, %26 : vector<56x128xf32>
    %28 = arith.addf %22, %27 : vector<56x128xf32>
    %29 = vector.extract_strided_slice %13 {offsets = [0, 2], sizes = [56, 1], strides = [1, 1]} : vector<56x8xf32> to vector<56x1xf32>
    %30 = vector.extract_strided_slice %0 {offsets = [2, 0], sizes = [1, 128], strides = [1, 1]} : vector<8x128xf32> to vector<1x128xf32>
    %31 = vector.broadcast %29 : vector<56x1xf32> to vector<56x128xf32>
    %32 = vector.broadcast %30 : vector<1x128xf32> to vector<56x128xf32>
    %33 = arith.mulf %31, %32 : vector<56x128xf32>
    %34 = arith.addf %28, %33 : vector<56x128xf32>
    %35 = vector.extract_strided_slice %13 {offsets = [0, 3], sizes = [56, 1], strides = [1, 1]} : vector<56x8xf32> to vector<56x1xf32>
    %36 = vector.extract_strided_slice %0 {offsets = [3, 0], sizes = [1, 128], strides = [1, 1]} : vector<8x128xf32> to vector<1x128xf32>
    %37 = vector.broadcast %35 : vector<56x1xf32> to vector<56x128xf32>
    %38 = vector.broadcast %36 : vector<1x128xf32> to vector<56x128xf32>
    %39 = arith.mulf %37, %38 : vector<56x128xf32>
    %40 = arith.addf %34, %39 : vector<56x128xf32>
    %41 = vector.extract_strided_slice %13 {offsets = [0, 4], sizes = [56, 1], strides = [1, 1]} : vector<56x8xf32> to vector<56x1xf32>
    %42 = vector.extract_strided_slice %0 {offsets = [4, 0], sizes = [1, 128], strides = [1, 1]} : vector<8x128xf32> to vector<1x128xf32>
    %43 = vector.broadcast %41 : vector<56x1xf32> to vector<56x128xf32>
    %44 = vector.broadcast %42 : vector<1x128xf32> to vector<56x128xf32>
    %45 = arith.mulf %43, %44 : vector<56x128xf32>
    %46 = arith.addf %40, %45 : vector<56x128xf32>
    %47 = vector.extract_strided_slice %13 {offsets = [0, 5], sizes = [56, 1], strides = [1, 1]} : vector<56x8xf32> to vector<56x1xf32>
    %48 = vector.extract_strided_slice %0 {offsets = [5, 0], sizes = [1, 128], strides = [1, 1]} : vector<8x128xf32> to vector<1x128xf32>
    %49 = vector.broadcast %47 : vector<56x1xf32> to vector<56x128xf32>
    %50 = vector.broadcast %48 : vector<1x128xf32> to vector<56x128xf32>
    %51 = arith.mulf %49, %50 : vector<56x128xf32>
    %52 = arith.addf %46, %51 : vector<56x128xf32>
    %53 = vector.extract_strided_slice %13 {offsets = [0, 6], sizes = [56, 1], strides = [1, 1]} : vector<56x8xf32> to vector<56x1xf32>
    %54 = vector.extract_strided_slice %0 {offsets = [6, 0], sizes = [1, 128], strides = [1, 1]} : vector<8x128xf32> to vector<1x128xf32>
    %55 = vector.broadcast %53 : vector<56x1xf32> to vector<56x128xf32>
    %56 = vector.broadcast %54 : vector<1x128xf32> to vector<56x128xf32>
    %57 = arith.mulf %55, %56 : vector<56x128xf32>
    %58 = arith.addf %52, %57 : vector<56x128xf32>
    %59 = vector.extract_strided_slice %13 {offsets = [0, 7], sizes = [56, 1], strides = [1, 1]} : vector<56x8xf32> to vector<56x1xf32>
    %60 = vector.extract_strided_slice %0 {offsets = [7, 0], sizes = [1, 128], strides = [1, 1]} : vector<8x128xf32> to vector<1x128xf32>
    %61 = vector.broadcast %59 : vector<56x1xf32> to vector<56x128xf32>
    %62 = vector.broadcast %60 : vector<1x128xf32> to vector<56x128xf32>
    %63 = arith.mulf %61, %62 : vector<56x128xf32>
    %64 = arith.addf %58, %63 : vector<56x128xf32>
    %cst = arith.constant 0.000000e+00 : f32
    %65 = vector.broadcast %cst : f32 to vector<56x128xf32>
    %66 = arith.maximumf %64, %65 : vector<56x128xf32>
    %67 = arith.truncf %66 : vector<56x128xf32> to vector<56x128xbf16>
    %cst_13 = arith.constant dense<0.000000e+00> : vector<56x128xf32>
    %68 = tpu.matmul %67, %9, %cst_13 {dimension_numbers = #tpu.dot_dimension_numbers<[1], [0], [0], [1], [0, 0, 1, 1], [], []>} : vector<56x128xbf16>, vector<128x128xbf16>, vector<56x128xf32> -> vector<56x128xf32>
    %69 = vector.broadcast %4 : vector<1x128xf32> to vector<56x128xf32>
    %70 = arith.addf %68, %69 : vector<56x128xf32>
    %cst_14 = arith.constant 0.000000e+00 : f32
    %71 = vector.broadcast %cst_14 : f32 to vector<56x128xf32>
    %72 = arith.maximumf %70, %71 : vector<56x128xf32>
    %73 = arith.truncf %72 : vector<56x128xf32> to vector<56x128xbf16>
    %cst_15 = arith.constant dense<0.000000e+00> : vector<56x128xf32>
    %74 = tpu.matmul %73, %10, %cst_15 {dimension_numbers = #tpu.dot_dimension_numbers<[1], [0], [0], [1], [0, 0, 1, 1], [], []>} : vector<56x128xbf16>, vector<128x128xbf16>, vector<56x128xf32> -> vector<56x128xf32>
    %75 = vector.broadcast %5 : vector<1x128xf32> to vector<56x128xf32>
    %76 = arith.addf %74, %75 : vector<56x128xf32>
    %77 = vector.extract_strided_slice %76 {offsets = [0, 32], sizes = [8, 1], strides = [1, 1]} : vector<56x128xf32> to vector<8x1xf32>
    %78 = vector.extract_strided_slice %76 {offsets = [8, 0], sizes = [48, 32], strides = [1, 1]} : vector<56x128xf32> to vector<48x32xf32>
    %79 = vector.extract_strided_slice %13 {offsets = [8, 4], sizes = [48, 4], strides = [1, 1]} : vector<56x8xf32> to vector<48x4xf32>
    %80 = arith.mulf %79, %79 : vector<48x4xf32>
    %cst_16 = arith.constant dense<0.000000e+00> : vector<48xf32>
    %81 = vector.multi_reduction <add>, %80, %cst_16 [1] : vector<48x4xf32> to vector<48xf32>
    %82 = vector.shape_cast %81 : vector<48xf32> to vector<48x1xf32>
    %83 = math.sqrt %82 : vector<48x1xf32>
    %84 = math.tanh %83 : vector<48x1xf32>
    %85 = vector.broadcast %84 : vector<48x1xf32> to vector<48x32xf32>
    %86 = arith.mulf %78, %85 : vector<48x32xf32>
    %87 = vector.extract_strided_slice %86 {offsets = [0, 0], sizes = [16, 32], strides = [1, 1]} : vector<48x32xf32> to vector<16x32xf32>
    %cst_17 = arith.constant dense<0.000000e+00> : vector<32xf32>
    %88 = vector.multi_reduction <add>, %87, %cst_17 [0] : vector<16x32xf32> to vector<32xf32>
    %89 = vector.shape_cast %88 : vector<32xf32> to vector<1x32xf32>
    %cst_18 = arith.constant 1.600000e+01 : f32
    %90 = vector.broadcast %cst_18 : f32 to vector<1x32xf32>
    %91 = arith.divf %89, %90 : vector<1x32xf32>
    %cst_19 = arith.constant 7.500000e-02 : f32
    %92 = vector.broadcast %cst_19 : f32 to vector<1x32xf32>
    %93 = arith.mulf %91, %92 : vector<1x32xf32>
    %94 = vector.extract_strided_slice %14 {offsets = [0, 0], sizes = [8, 1], strides = [1, 1]} : vector<8x16xf32> to vector<8x1xf32>
    %95 = vector.extract_strided_slice %2 {offsets = [0, 0], sizes = [1, 256], strides = [1, 1]} : vector<16x256xf32> to vector<1x256xf32>
    %96 = vector.broadcast %94 : vector<8x1xf32> to vector<8x256xf32>
    %97 = vector.broadcast %95 : vector<1x256xf32> to vector<8x256xf32>
    %98 = arith.mulf %96, %97 : vector<8x256xf32>
    %99 = vector.broadcast %7 : vector<1x256xf32> to vector<8x256xf32>
    %100 = arith.addf %99, %98 : vector<8x256xf32>
    %101 = vector.extract_strided_slice %14 {offsets = [0, 1], sizes = [8, 1], strides = [1, 1]} : vector<8x16xf32> to vector<8x1xf32>
    %102 = vector.extract_strided_slice %2 {offsets = [1, 0], sizes = [1, 256], strides = [1, 1]} : vector<16x256xf32> to vector<1x256xf32>
    %103 = vector.broadcast %101 : vector<8x1xf32> to vector<8x256xf32>
    %104 = vector.broadcast %102 : vector<1x256xf32> to vector<8x256xf32>
    %105 = arith.mulf %103, %104 : vector<8x256xf32>
    %106 = arith.addf %100, %105 : vector<8x256xf32>
    %107 = vector.extract_strided_slice %14 {offsets = [0, 2], sizes = [8, 1], strides = [1, 1]} : vector<8x16xf32> to vector<8x1xf32>
    %108 = vector.extract_strided_slice %2 {offsets = [2, 0], sizes = [1, 256], strides = [1, 1]} : vector<16x256xf32> to vector<1x256xf32>
    %109 = vector.broadcast %107 : vector<8x1xf32> to vector<8x256xf32>
    %110 = vector.broadcast %108 : vector<1x256xf32> to vector<8x256xf32>
    %111 = arith.mulf %109, %110 : vector<8x256xf32>
    %112 = arith.addf %106, %111 : vector<8x256xf32>
    %113 = vector.extract_strided_slice %14 {offsets = [0, 3], sizes = [8, 1], strides = [1, 1]} : vector<8x16xf32> to vector<8x1xf32>
    %114 = vector.extract_strided_slice %2 {offsets = [3, 0], sizes = [1, 256], strides = [1, 1]} : vector<16x256xf32> to vector<1x256xf32>
    %115 = vector.broadcast %113 : vector<8x1xf32> to vector<8x256xf32>
    %116 = vector.broadcast %114 : vector<1x256xf32> to vector<8x256xf32>
    %117 = arith.mulf %115, %116 : vector<8x256xf32>
    %118 = arith.addf %112, %117 : vector<8x256xf32>
    %119 = vector.extract_strided_slice %14 {offsets = [0, 4], sizes = [8, 1], strides = [1, 1]} : vector<8x16xf32> to vector<8x1xf32>
    %120 = vector.extract_strided_slice %2 {offsets = [4, 0], sizes = [1, 256], strides = [1, 1]} : vector<16x256xf32> to vector<1x256xf32>
    %121 = vector.broadcast %119 : vector<8x1xf32> to vector<8x256xf32>
    %122 = vector.broadcast %120 : vector<1x256xf32> to vector<8x256xf32>
    %123 = arith.mulf %121, %122 : vector<8x256xf32>
    %124 = arith.addf %118, %123 : vector<8x256xf32>
    %125 = vector.extract_strided_slice %14 {offsets = [0, 5], sizes = [8, 1], strides = [1, 1]} : vector<8x16xf32> to vector<8x1xf32>
    %126 = vector.extract_strided_slice %2 {offsets = [5, 0], sizes = [1, 256], strides = [1, 1]} : vector<16x256xf32> to vector<1x256xf32>
    %127 = vector.broadcast %125 : vector<8x1xf32> to vector<8x256xf32>
    %128 = vector.broadcast %126 : vector<1x256xf32> to vector<8x256xf32>
    %129 = arith.mulf %127, %128 : vector<8x256xf32>
    %130 = arith.addf %124, %129 : vector<8x256xf32>
    %131 = vector.extract_strided_slice %14 {offsets = [0, 6], sizes = [8, 1], strides = [1, 1]} : vector<8x16xf32> to vector<8x1xf32>
    %132 = vector.extract_strided_slice %2 {offsets = [6, 0], sizes = [1, 256], strides = [1, 1]} : vector<16x256xf32> to vector<1x256xf32>
    %133 = vector.broadcast %131 : vector<8x1xf32> to vector<8x256xf32>
    %134 = vector.broadcast %132 : vector<1x256xf32> to vector<8x256xf32>
    %135 = arith.mulf %133, %134 : vector<8x256xf32>
    %136 = arith.addf %130, %135 : vector<8x256xf32>
    %137 = vector.extract_strided_slice %14 {offsets = [0, 7], sizes = [8, 1], strides = [1, 1]} : vector<8x16xf32> to vector<8x1xf32>
    %138 = vector.extract_strided_slice %2 {offsets = [7, 0], sizes = [1, 256], strides = [1, 1]} : vector<16x256xf32> to vector<1x256xf32>
    %139 = vector.broadcast %137 : vector<8x1xf32> to vector<8x256xf32>
    %140 = vector.broadcast %138 : vector<1x256xf32> to vector<8x256xf32>
    %141 = arith.mulf %139, %140 : vector<8x256xf32>
    %142 = arith.addf %136, %141 : vector<8x256xf32>
    %143 = vector.extract_strided_slice %14 {offsets = [0, 8], sizes = [8, 1], strides = [1, 1]} : vector<8x16xf32> to vector<8x1xf32>
    %144 = vector.extract_strided_slice %2 {offsets = [8, 0], sizes = [1, 256], strides = [1, 1]} : vector<16x256xf32> to vector<1x256xf32>
    %145 = vector.broadcast %143 : vector<8x1xf32> to vector<8x256xf32>
    %146 = vector.broadcast %144 : vector<1x256xf32> to vector<8x256xf32>
    %147 = arith.mulf %145, %146 : vector<8x256xf32>
    %148 = arith.addf %142, %147 : vector<8x256xf32>
    %149 = vector.extract_strided_slice %14 {offsets = [0, 9], sizes = [8, 1], strides = [1, 1]} : vector<8x16xf32> to vector<8x1xf32>
    %150 = vector.extract_strided_slice %2 {offsets = [9, 0], sizes = [1, 256], strides = [1, 1]} : vector<16x256xf32> to vector<1x256xf32>
    %151 = vector.broadcast %149 : vector<8x1xf32> to vector<8x256xf32>
    %152 = vector.broadcast %150 : vector<1x256xf32> to vector<8x256xf32>
    %153 = arith.mulf %151, %152 : vector<8x256xf32>
    %154 = arith.addf %148, %153 : vector<8x256xf32>
    %155 = vector.extract_strided_slice %14 {offsets = [0, 10], sizes = [8, 1], strides = [1, 1]} : vector<8x16xf32> to vector<8x1xf32>
    %156 = vector.extract_strided_slice %2 {offsets = [10, 0], sizes = [1, 256], strides = [1, 1]} : vector<16x256xf32> to vector<1x256xf32>
    %157 = vector.broadcast %155 : vector<8x1xf32> to vector<8x256xf32>
    %158 = vector.broadcast %156 : vector<1x256xf32> to vector<8x256xf32>
    %159 = arith.mulf %157, %158 : vector<8x256xf32>
    %160 = arith.addf %154, %159 : vector<8x256xf32>
    %161 = vector.extract_strided_slice %14 {offsets = [0, 11], sizes = [8, 1], strides = [1, 1]} : vector<8x16xf32> to vector<8x1xf32>
    %162 = vector.extract_strided_slice %2 {offsets = [11, 0], sizes = [1, 256], strides = [1, 1]} : vector<16x256xf32> to vector<1x256xf32>
    %163 = vector.broadcast %161 : vector<8x1xf32> to vector<8x256xf32>
    %164 = vector.broadcast %162 : vector<1x256xf32> to vector<8x256xf32>
    %165 = arith.mulf %163, %164 : vector<8x256xf32>
    %166 = arith.addf %160, %165 : vector<8x256xf32>
    %167 = vector.extract_strided_slice %14 {offsets = [0, 12], sizes = [8, 1], strides = [1, 1]} : vector<8x16xf32> to vector<8x1xf32>
    %168 = vector.extract_strided_slice %2 {offsets = [12, 0], sizes = [1, 256], strides = [1, 1]} : vector<16x256xf32> to vector<1x256xf32>
    %169 = vector.broadcast %167 : vector<8x1xf32> to vector<8x256xf32>
    %170 = vector.broadcast %168 : vector<1x256xf32> to vector<8x256xf32>
    %171 = arith.mulf %169, %170 : vector<8x256xf32>
    %172 = arith.addf %166, %171 : vector<8x256xf32>
    %173 = vector.extract_strided_slice %14 {offsets = [0, 13], sizes = [8, 1], strides = [1, 1]} : vector<8x16xf32> to vector<8x1xf32>
    %174 = vector.extract_strided_slice %2 {offsets = [13, 0], sizes = [1, 256], strides = [1, 1]} : vector<16x256xf32> to vector<1x256xf32>
    %175 = vector.broadcast %173 : vector<8x1xf32> to vector<8x256xf32>
    %176 = vector.broadcast %174 : vector<1x256xf32> to vector<8x256xf32>
    %177 = arith.mulf %175, %176 : vector<8x256xf32>
    %178 = arith.addf %172, %177 : vector<8x256xf32>
    %179 = vector.extract_strided_slice %14 {offsets = [0, 14], sizes = [8, 1], strides = [1, 1]} : vector<8x16xf32> to vector<8x1xf32>
    %180 = vector.extract_strided_slice %2 {offsets = [14, 0], sizes = [1, 256], strides = [1, 1]} : vector<16x256xf32> to vector<1x256xf32>
    %181 = vector.broadcast %179 : vector<8x1xf32> to vector<8x256xf32>
    %182 = vector.broadcast %180 : vector<1x256xf32> to vector<8x256xf32>
    %183 = arith.mulf %181, %182 : vector<8x256xf32>
    %184 = arith.addf %178, %183 : vector<8x256xf32>
    %185 = vector.extract_strided_slice %14 {offsets = [0, 15], sizes = [8, 1], strides = [1, 1]} : vector<8x16xf32> to vector<8x1xf32>
    %186 = vector.extract_strided_slice %2 {offsets = [15, 0], sizes = [1, 256], strides = [1, 1]} : vector<16x256xf32> to vector<1x256xf32>
    %187 = vector.broadcast %185 : vector<8x1xf32> to vector<8x256xf32>
    %188 = vector.broadcast %186 : vector<1x256xf32> to vector<8x256xf32>
    %189 = arith.mulf %187, %188 : vector<8x256xf32>
    %190 = arith.addf %184, %189 : vector<8x256xf32>
    %cst_20 = arith.constant 0.000000e+00 : f32
    %191 = vector.broadcast %cst_20 : f32 to vector<8x256xf32>
    %192 = arith.maximumf %190, %191 : vector<8x256xf32>
    %193 = arith.truncf %192 : vector<8x256xf32> to vector<8x256xbf16>
    %cst_21 = arith.constant dense<0.000000e+00> : vector<8x256xf32>
    %194 = tpu.matmul %193, %11, %cst_21 {dimension_numbers = #tpu.dot_dimension_numbers<[1], [0], [0], [1], [0, 0, 1, 1], [], []>} : vector<8x256xbf16>, vector<256x256xbf16>, vector<8x256xf32> -> vector<8x256xf32>
    %195 = vector.broadcast %8 : vector<1x256xf32> to vector<8x256xf32>
    %196 = arith.addf %194, %195 : vector<8x256xf32>
    %cst_22 = arith.constant 0.000000e+00 : f32
    %197 = vector.broadcast %cst_22 : f32 to vector<8x256xf32>
    %198 = arith.maximumf %196, %197 : vector<8x256xf32>
    %199 = arith.truncf %198 : vector<8x256xf32> to vector<8x256xbf16>
    %cst_23 = arith.constant dense<0.000000e+00> : vector<8x128xf32>
    %200 = tpu.matmul %199, %12, %cst_23 {dimension_numbers = #tpu.dot_dimension_numbers<[1], [0], [0], [1], [0, 0, 1, 1], [], []>} : vector<8x256xbf16>, vector<256x128xbf16>, vector<8x128xf32> -> vector<8x128xf32>
    %201 = vector.broadcast %6 : vector<1x128xf32> to vector<8x128xf32>
    %202 = arith.addf %200, %201 : vector<8x128xf32>
    %203 = vector.extract_strided_slice %86 {offsets = [16, 0], sizes = [8, 32], strides = [1, 1]} : vector<48x32xf32> to vector<8x32xf32>
    %204 = vector.extract_strided_slice %202 {offsets = [0, 0], sizes = [8, 32], strides = [1, 1]} : vector<8x128xf32> to vector<8x32xf32>
    %205 = vector.broadcast %93 : vector<1x32xf32> to vector<8x32xf32>
    %206 = arith.subf %203, %205 : vector<8x32xf32>
    %207 = arith.mulf %204, %206 : vector<8x32xf32>
    %cst_24 = arith.constant dense<0.000000e+00> : vector<8xf32>
    %208 = vector.multi_reduction <add>, %207, %cst_24 [1] : vector<8x32xf32> to vector<8xf32>
    %209 = vector.shape_cast %208 : vector<8xf32> to vector<8x1xf32>
    %cst_25 = arith.constant 2.500000e-01 : f32
    %210 = vector.broadcast %cst_25 : f32 to vector<8x1xf32>
    %211 = arith.mulf %77, %210 : vector<8x1xf32>
    %212 = arith.subf %77, %211 : vector<8x1xf32>
    %213 = arith.addf %212, %209 : vector<8x1xf32>
    %214 = vector.extract_strided_slice %86 {offsets = [24, 0], sizes = [8, 32], strides = [1, 1]} : vector<48x32xf32> to vector<8x32xf32>
    %215 = vector.extract_strided_slice %202 {offsets = [0, 32], sizes = [8, 32], strides = [1, 1]} : vector<8x128xf32> to vector<8x32xf32>
    %216 = vector.broadcast %93 : vector<1x32xf32> to vector<8x32xf32>
    %217 = arith.subf %214, %216 : vector<8x32xf32>
    %218 = arith.mulf %215, %217 : vector<8x32xf32>
    %cst_26 = arith.constant dense<0.000000e+00> : vector<8xf32>
    %219 = vector.multi_reduction <add>, %218, %cst_26 [1] : vector<8x32xf32> to vector<8xf32>
    %220 = vector.shape_cast %219 : vector<8xf32> to vector<8x1xf32>
    %cst_27 = arith.constant 2.500000e-01 : f32
    %221 = vector.broadcast %cst_27 : f32 to vector<8x1xf32>
    %222 = arith.mulf %213, %221 : vector<8x1xf32>
    %223 = arith.subf %213, %222 : vector<8x1xf32>
    %224 = arith.addf %223, %220 : vector<8x1xf32>
    %225 = vector.extract_strided_slice %86 {offsets = [32, 0], sizes = [8, 32], strides = [1, 1]} : vector<48x32xf32> to vector<8x32xf32>
    %226 = vector.extract_strided_slice %202 {offsets = [0, 64], sizes = [8, 32], strides = [1, 1]} : vector<8x128xf32> to vector<8x32xf32>
    %227 = vector.broadcast %93 : vector<1x32xf32> to vector<8x32xf32>
    %228 = arith.subf %225, %227 : vector<8x32xf32>
    %229 = arith.mulf %226, %228 : vector<8x32xf32>
    %cst_28 = arith.constant dense<0.000000e+00> : vector<8xf32>
    %230 = vector.multi_reduction <add>, %229, %cst_28 [1] : vector<8x32xf32> to vector<8xf32>
    %231 = vector.shape_cast %230 : vector<8xf32> to vector<8x1xf32>
    %cst_29 = arith.constant 2.500000e-01 : f32
    %232 = vector.broadcast %cst_29 : f32 to vector<8x1xf32>
    %233 = arith.mulf %224, %232 : vector<8x1xf32>
    %234 = arith.subf %224, %233 : vector<8x1xf32>
    %235 = arith.addf %234, %231 : vector<8x1xf32>
    %236 = vector.extract_strided_slice %86 {offsets = [40, 0], sizes = [8, 32], strides = [1, 1]} : vector<48x32xf32> to vector<8x32xf32>
    %237 = vector.extract_strided_slice %202 {offsets = [0, 96], sizes = [8, 32], strides = [1, 1]} : vector<8x128xf32> to vector<8x32xf32>
    %238 = vector.broadcast %93 : vector<1x32xf32> to vector<8x32xf32>
    %239 = arith.subf %236, %238 : vector<8x32xf32>
    %240 = arith.mulf %237, %239 : vector<8x32xf32>
    %cst_30 = arith.constant dense<0.000000e+00> : vector<8xf32>
    %241 = vector.multi_reduction <add>, %240, %cst_30 [1] : vector<8x32xf32> to vector<8xf32>
    %242 = vector.shape_cast %241 : vector<8xf32> to vector<8x1xf32>
    %cst_31 = arith.constant 2.500000e-01 : f32
    %243 = vector.broadcast %cst_31 : f32 to vector<8x1xf32>
    %244 = arith.mulf %235, %243 : vector<8x1xf32>
    %245 = arith.subf %235, %244 : vector<8x1xf32>
    %246 = arith.addf %245, %242 : vector<8x1xf32>
    %247 = arith.mulf %15, %15 : vector<8x4xf32>
    %cst_32 = arith.constant dense<0.000000e+00> : vector<8xf32>
    %248 = vector.multi_reduction <add>, %247, %cst_32 [1] : vector<8x4xf32> to vector<8xf32>
    %249 = vector.shape_cast %248 : vector<8xf32> to vector<8x1xf32>
    %250 = tpu.iota {dimensions = array<i32: 1>} : vector<8x128xi32>
    %c0_i32 = arith.constant 0 : i32
    %251 = vector.broadcast %c0_i32 : i32 to vector<8x128xi32>
    %252 = arith.cmpi eq, %250, %251 : vector<8x128xi32>
    %c1_i32 = arith.constant 1 : i32
    %253 = vector.broadcast %c1_i32 : i32 to vector<8x128xi32>
    %254 = arith.cmpi eq, %250, %253 : vector<8x128xi32>
    %cst_33 = arith.constant 0.000000e+00 : f32
    %255 = vector.shape_cast %249 : vector<8x1xf32> to vector<8x1xf32>
    %256 = vector.broadcast %255 : vector<8x1xf32> to vector<8x128xf32>
    %257 = vector.broadcast %cst_33 : f32 to vector<8x128xf32>
    %258 = arith.select %254, %256, %257 : vector<8x128xi1>, vector<8x128xf32>
    %259 = vector.shape_cast %246 : vector<8x1xf32> to vector<8x1xf32>
    %260 = vector.broadcast %259 : vector<8x1xf32> to vector<8x128xf32>
    %261 = arith.select %252, %260, %258 : vector<8x128xi1>, vector<8x128xf32>
    %c0_34 = arith.constant 0 : index
    %c0_35 = arith.constant 0 : index
    %262 = vector.load %arg3[%c0_34, %c0_35] : memref<8x128xf32, #tpu.memory_space<vmem>>, vector<8x128xf32>
    tpu.vector_store %arg3[%c0_34, %c0_35], %261 {strides = array<i32>} : memref<8x128xf32, #tpu.memory_space<vmem>>, vector<8x128xf32>,
    return
  }
}

</mosaic_0001>

<llo_original>
// kernel: bsdeg_forward.1
$region0: #{bsdeg_forward.1}
  #allocation0 [shape = 'u32[]', space=smem, size = 0x4, offset = 0x4, fixed_abs, tag = 'smem constant byte address 0x4 - core index']
  #allocation1 [shape = 'u32[144,128]{1,0:T(1,128)}', space=vmem, size = 0x12000, scoped, tag = 'internal scratch']
  %s0 = inlined_call_operand.hbm [shape: bf16[640,256], index: 0, kind: input, shape index: {}]
  %s1 = inlined_call_operand.vmem [shape: f32[32,256], index: 1, kind: input, shape index: {}]
  %s2 = inlined_call_operand.vmem [shape: f32[64,32], index: 2, kind: input, shape index: {}]
  %s3 = inlined_call_operand.vmem [shape: f32[8,128], index: 3, kind: output, shape index: {}]
  %s4 = sld [smem:[#allocation0]]
  $region26: #{bsdeg_forward.1} parent=0
    _
  %s6 = ssub.s32 1, %s4
  %s7 = scalar_select 0, %s6, %s4
  $region1: #{bsdeg_forward.1} parent=0
    #allocation2 [shape = 'u8[327680]{0}', space=vmem, size = 0x50000, scoped, tag = 'input window, operand 0, single buffered']
    #allocation3 [shape = 's32[1]{0}', space=sflag, size = 0x4, scoped, tag = 'scoped memory for bsdeg_forward.1']
    %8 = vsyncpa [#allocation3], 0
    // Predicated region
    $region2: #{bsdeg_forward.1} parent=1 // pred_check
      _
    $region3: #{bsdeg_forward.1} parent=1 // pred_check_branch
      %10 = sbr.rel (0) target = $region5
    $region4: #{bsdeg_forward.1} parent=1 // pred_region
      %s12 = ssub.s32 10240, 10240
      %13 = vsyncadd [#allocation3], %s12
      %s14 = sshll.u32 [#allocation2], 4
      %s15 = int_to_ptr.vmem [resolvable:$true] %s14
      %20 = dma.hbm_to_vmem [thread:$0]  %s0, 10240, %s15, [#allocation3], 128, 128, 8
    $region5: #{bsdeg_forward.1} parent=1 // pred_fallthru
      _
    // Predicated region
    $region6: #{bsdeg_forward.1} parent=1 // pred_check
      _
    $region7: #{bsdeg_forward.1} parent=1 // pred_check_branch
      %22 = sbr.rel (0) target = $region9
    $region8: #{bsdeg_forward.1} parent=1 // pred_region
      _
    $region9: #{bsdeg_forward.1} parent=1 // pred_fallthru
      _
    // Predicated region
    $region10: #{bsdeg_forward.1} parent=1 // pred_check
      _
    $region11: #{bsdeg_forward.1} parent=1 // pred_check_branch
      %24 = sbr.rel (0) target = $region13
    $region12: #{bsdeg_forward.1} parent=1 // pred_region
      _
    $region13: #{bsdeg_forward.1} parent=1 // pred_fallthru
      _
    // Predicated region
    $region14: #{bsdeg_forward.1} parent=1 // pred_check
      _
    $region15: #{bsdeg_forward.1} parent=1 // pred_check_branch
      %26 = sbr.rel (0) target = $region17
    $region16: #{bsdeg_forward.1} parent=1 // pred_region
      %27 = dma.done [#allocation3], 10240
    $region17: #{bsdeg_forward.1} parent=1 // pred_fallthru
      _
    %v29 = vld [vmem:[%s1] sm:$0xff]
    %v30 = vld [vmem:[%s1 + $0x10] sm:$0xff]
    %v31 = vld [vmem:[%s1 + $0x18] sm:$0xff]
    %v32 = vld [vmem:[%s1 + $0x20] sm:$0xff]
    %v33 = vld [vmem:[%s1 + $0x28] sm:$0xff]
    %v34 = vld [vmem:[%s1 + $0x30] sm:$0xff]
    %v35 = vld [vmem:[%s1 + $0x38] sm:$0xff]
    %v36 = vld [vmem:[#allocation2] sm:$0xf]
    %v37 = vld [vmem:[#allocation2 + $0x8] sm:$0xf]
    %v38 = vld [vmem:[#allocation2 + $0x10] sm:$0xf]
    %v39 = vld [vmem:[#allocation2 + $0x18] sm:$0xf]
    %v40 = vld [vmem:[#allocation2 + $0x20] sm:$0xf]
    %v41 = vld [vmem:[#allocation2 + $0x28] sm:$0xf]
    %v42 = vld [vmem:[#allocation2 + $0x30] sm:$0xf]
    %v43 = vld [vmem:[#allocation2 + $0x38] sm:$0xf]
    %v44 = vld [vmem:[#allocation2 + $0x40] sm:$0xf]
    %v45 = vld [vmem:[#allocation2 + $0x48] sm:$0xf]
    %v46 = vld [vmem:[#allocation2 + $0x50] sm:$0xf]
    %v47 = vld [vmem:[#allocation2 + $0x58] sm:$0xf]
    %v48 = vld [vmem:[#allocation2 + $0x60] sm:$0xf]
    %v49 = vld [vmem:[#allocation2 + $0x68] sm:$0xf]
    %v50 = vld [vmem:[#allocation2 + $0x70] sm:$0xf]
    %v51 = vld [vmem:[#allocation2 + $0x78] sm:$0xf]
    %v52 = vld [vmem:[#allocation2 + $0x4] sm:$0xf]
    %v53 = vld [vmem:[#allocation2 + $0xc] sm:$0xf]
    %v54 = vld [vmem:[#allocation2 + $0x14] sm:$0xf]
    %v55 = vld [vmem:[#allocation2 + $0x1c] sm:$0xf]
    %v56 = vld [vmem:[#allocation2 + $0x24] sm:$0xf]
    %v57 = vld [vmem:[#allocation2 + $0x2c] sm:$0xf]
    %v58 = vld [vmem:[#allocation2 + $0x34] sm:$0xf]
    %v59 = vld [vmem:[#allocation2 + $0x3c] sm:$0xf]
    %v60 = vld [vmem:[#allocation2 + $0x44] sm:$0xf]
    %v61 = vld [vmem:[#allocation2 + $0x4c] sm:$0xf]
    %v62 = vld [vmem:[#allocation2 + $0x54] sm:$0xf]
    %v63 = vld [vmem:[#allocation2 + $0x5c] sm:$0xf]
    %v64 = vld [vmem:[#allocation2 + $0x64] sm:$0xf]
    %v65 = vld [vmem:[#allocation2 + $0x6c] sm:$0xf]
    %v66 = vld [vmem:[#allocation2 + $0x74] sm:$0xf]
    %v67 = vld [vmem:[#allocation2 + $0x7c] sm:$0xf]
    %v68 = vld [vmem:[#allocation2 + $0x80] sm:$0xff]
    %v69 = vld [vmem:[#allocation2 + $0x88] sm:$0xff]
    %v70 = vld [vmem:[#allocation2 + $0x90] sm:$0xff]
    %v71 = vld [vmem:[#allocation2 + $0x98] sm:$0xff]
    %v72 = vld [vmem:[#allocation2 + $0xa0] sm:$0xff]
    %v73 = vld [vmem:[#allocation2 + $0xa8] sm:$0xff]
    %v74 = vld [vmem:[#allocation2 + $0xb0] sm:$0xff]
    %v75 = vld [vmem:[#allocation2 + $0xb8] sm:$0xff]
    %v76 = vld [vmem:[#allocation2 + $0xc0] sm:$0xff]
    %v77 = vld [vmem:[#allocation2 + $0xc8] sm:$0xff]
    %v78 = vld [vmem:[#allocation2 + $0xd0] sm:$0xff]
    %v79 = vld [vmem:[#allocation2 + $0xd8] sm:$0xff]
    %v80 = vld [vmem:[#allocation2 + $0xe0] sm:$0xff]
    %v81 = vld [vmem:[#allocation2 + $0xe8] sm:$0xff]
    %v82 = vld [vmem:[#allocation2 + $0xf0] sm:$0xff]
    %v83 = vld [vmem:[#allocation2 + $0xf8] sm:$0xff]
    %v84 = vld [vmem:[#allocation2 + $0x100] sm:$0xff]
    %v85 = vld [vmem:[#allocation2 + $0x108] sm:$0xff]
    %v86 = vld [vmem:[#allocation2 + $0x110] sm:$0xff]
    %v87 = vld [vmem:[#allocation2 + $0x118] sm:$0xff]
    %v88 = vld [vmem:[#allocation2 + $0x120] sm:$0xff]
    %v89 = vld [vmem:[#allocation2 + $0x128] sm:$0xff]
    %v90 = vld [vmem:[#allocation2 + $0x130] sm:$0xff]
    %v91 = vld [vmem:[#allocation2 + $0x138] sm:$0xff]
    %v92 = vld [vmem:[#allocation2 + $0x140] sm:$0xff]
    %v93 = vld [vmem:[#allocation2 + $0x148] sm:$0xff]
    %v94 = vld [vmem:[#allocation2 + $0x150] sm:$0xff]
    %v95 = vld [vmem:[#allocation2 + $0x158] sm:$0xff]
    %v96 = vld [vmem:[#allocation2 + $0x160] sm:$0xff]
    %v97 = vld [vmem:[#allocation2 + $0x168] sm:$0xff]
    %v98 = vld [vmem:[#allocation2 + $0x170] sm:$0xff]
    %v99 = vld [vmem:[#allocation2 + $0x178] sm:$0xff]
    %v100 = vld [vmem:[#allocation2 + $0x180] sm:$0xf]
    %v101 = vld [vmem:[#allocation2 + $0x188] sm:$0xf]
    %v102 = vld [vmem:[#allocation2 + $0x190] sm:$0xf]
    %v103 = vld [vmem:[#allocation2 + $0x198] sm:$0xf]
    %v104 = vld [vmem:[#allocation2 + $0x1a0] sm:$0xf]
    %v105 = vld [vmem:[#allocation2 + $0x1a8] sm:$0xf]
    %v106 = vld [vmem:[#allocation2 + $0x1b0] sm:$0xf]
    %v107 = vld [vmem:[#allocation2 + $0x1b8] sm:$0xf]
    %v108 = vld [vmem:[#allocation2 + $0x1c0] sm:$0xf]
    %v109 = vld [vmem:[#allocation2 + $0x1c8] sm:$0xf]
    %v110 = vld [vmem:[#allocation2 + $0x1d0] sm:$0xf]
    %v111 = vld [vmem:[#allocation2 + $0x1d8] sm:$0xf]
    %v112 = vld [vmem:[#allocation2 + $0x1e0] sm:$0xf]
    %v113 = vld [vmem:[#allocation2 + $0x1e8] sm:$0xf]
    %v114 = vld [vmem:[#allocation2 + $0x1f0] sm:$0xf]
    %v115 = vld [vmem:[#allocation2 + $0x1f8] sm:$0xf]
    %v116 = vld [vmem:[#allocation2 + $0x200] sm:$0xf]
    %v117 = vld [vmem:[#allocation2 + $0x208] sm:$0xf]
    %v118 = vld [vmem:[#allocation2 + $0x210] sm:$0xf]
    %v119 = vld [vmem:[#allocation2 + $0x218] sm:$0xf]
    %v120 = vld [vmem:[#allocation2 + $0x220] sm:$0xf]
    %v121 = vld [vmem:[#allocation2 + $0x228] sm:$0xf]
    %v122 = vld [vmem:[#allocation2 + $0x230] sm:$0xf]
    %v123 = vld [vmem:[#allocation2 + $0x238] sm:$0xf]
    %v124 = vld [vmem:[#allocation2 + $0x240] sm:$0xf]
    %v125 = vld [vmem:[#allocation2 + $0x248] sm:$0xf]
    %v126 = vld [vmem:[#allocation2 + $0x250] sm:$0xf]
    %v127 = vld [vmem:[#allocation2 + $0x258] sm:$0xf]
    %v128 = vld [vmem:[#allocation2 + $0x260] sm:$0xf]
    %v129 = vld [vmem:[#allocation2 + $0x268] sm:$0xf]
    %v130 = vld [vmem:[#allocation2 + $0x270] sm:$0xf]
    %v131 = vld [vmem:[#allocation2 + $0x278] sm:$0xf]
    %v132 = vld [vmem:[%s2] sm:$0xff]
    %v133 = vld [vmem:[%s2 + $0x8] sm:$0xff]
    %v134 = vld [vmem:[%s2 + $0x10] sm:$0xff]
    %v135 = vld [vmem:[%s2 + $0x18] sm:$0xff]
    %v136 = vld [vmem:[%s2 + $0x20] sm:$0xff]
    %v137 = vld [vmem:[%s2 + $0x28] sm:$0xff]
    %v138 = vld [vmem:[%s2 + $0x30] sm:$0xff]
    %v139 = vld [vmem:[%s2 + $0x38] sm:$0xff]
    %141 = vset.pattern.permute.xlu0 0
    %142 = vperm.xlu0 %141, %v132
    %v143 = vpop.permute.xlu0 %142
    %146 = vset.pattern.permute.xlu0 0
    %147 = vperm.xlu0 %146, %v133
    %v148 = vpop.permute.xlu0 %147
    %151 = vset.pattern.permute.xlu0 0
    %152 = vperm.xlu0 %151, %v134
    %v153 = vpop.permute.xlu0 %152
    %156 = vset.pattern.permute.xlu0 0
    %157 = vperm.xlu0 %156, %v135
    %v158 = vpop.permute.xlu0 %157
    %161 = vset.pattern.permute.xlu0 0
    %162 = vperm.xlu0 %161, %v136
    %v163 = vpop.permute.xlu0 %162
    %166 = vset.pattern.permute.xlu0 0
    %167 = vperm.xlu0 %166, %v137
    %v168 = vpop.permute.xlu0 %167
    %171 = vset.pattern.permute.xlu0 0
    %172 = vperm.xlu0 %171, %v138
    %v173 = vpop.permute.xlu0 %172
    %v175 = vlaneseq
    %v176 = vshrl.u32 %v175, 7
    %v177 = vsub.s32 0, %v176
    %v178 = vrot.slane %v29, %v177
    %v179 = vmul.f32 %v143, %v178
    %v180 = vmul.f32 %v148, %v178
    %v181 = vmul.f32 %v153, %v178
    %v182 = vmul.f32 %v158, %v178
    %v183 = vmul.f32 %v163, %v178
    %v184 = vmul.f32 %v168, %v178
    %v185 = vmul.f32 %v173, %v178
    %v186 = vlaneseq
    %v187 = vshrl.u32 %v186, 7
    %v188 = vsub.s32 0, %v187
    %v189 = vrot.slane %v30, %v188
    %v190 = vadd.f32 %v189, %v179
    %v191 = vadd.f32 %v189, %v180
    %v192 = vadd.f32 %v189, %v181
    %v193 = vadd.f32 %v189, %v182
    %v194 = vadd.f32 %v189, %v183
    %v195 = vadd.f32 %v189, %v184
    %v196 = vadd.f32 %v189, %v185
    %197 = vset.pattern.permute.xlu0 1
    %198 = vperm.xlu0 %197, %v132
    %v199 = vpop.permute.xlu0 %198
    %201 = vset.pattern.permute.xlu0 1
    %202 = vperm.xlu0 %201, %v133
    %v203 = vpop.permute.xlu0 %202
    %205 = vset.pattern.permute.xlu0 1
    %206 = vperm.xlu0 %205, %v134
    %v207 = vpop.permute.xlu0 %206
    %209 = vset.pattern.permute.xlu0 1
    %210 = vperm.xlu0 %209, %v135
    %v211 = vpop.permute.xlu0 %210
    %213 = vset.pattern.permute.xlu0 1
    %214 = vperm.xlu0 %213, %v136
    %v215 = vpop.permute.xlu0 %214
    %217 = vset.pattern.permute.xlu0 1
    %218 = vperm.xlu0 %217, %v137
    %v219 = vpop.permute.xlu0 %218
    %221 = vset.pattern.permute.xlu0 1
    %222 = vperm.xlu0 %221, %v138
    %v223 = vpop.permute.xlu0 %222
    %v225 = vlaneseq
    %v226 = vshrl.u32 %v225, 7
    %v227 = vsub.s32 1, %v226
    %v228 = vrot.slane %v29, %v227
    %v229 = vmul.f32 %v199, %v228
    %v230 = vmul.f32 %v203, %v228
    %v231 = vmul.f32 %v207, %v228
    %v232 = vmul.f32 %v211, %v228
    %v233 = vmul.f32 %v215, %v228
    %v234 = vmul.f32 %v219, %v228
    %v235 = vmul.f32 %v223, %v228
    %v236 = vadd.f32 %v190, %v229
    %v237 = vadd.f32 %v191, %v230
    %v238 = vadd.f32 %v192, %v231
    %v239 = vadd.f32 %v193, %v232
    %v240 = vadd.f32 %v194, %v233
    %v241 = vadd.f32 %v195, %v234
    %v242 = vadd.f32 %v196, %v235
    %243 = vset.pattern.permute.xlu0 2
    %244 = vperm.xlu0 %243, %v132
    %v245 = vpop.permute.xlu0 %244
    %247 = vset.pattern.permute.xlu0 2
    %248 = vperm.xlu0 %247, %v133
    %v249 = vpop.permute.xlu0 %248
    %251 = vset.pattern.permute.xlu0 2
    %252 = vperm.xlu0 %251, %v134
    %v253 = vpop.permute.xlu0 %252
    %255 = vset.pattern.permute.xlu0 2
    %256 = vperm.xlu0 %255, %v135
    %v257 = vpop.permute.xlu0 %256
    %259 = vset.pattern.permute.xlu0 2
    %260 = vperm.xlu0 %259, %v136
    %v261 = vpop.permute.xlu0 %260
    %263 = vset.pattern.permute.xlu0 2
    %264 = vperm.xlu0 %263, %v137
    %v265 = vpop.permute.xlu0 %264
    %267 = vset.pattern.permute.xlu0 2
    %268 = vperm.xlu0 %267, %v138
    %v269 = vpop.permute.xlu0 %268
    %v271 = vlaneseq
    %v272 = vshrl.u32 %v271, 7
    %v273 = vsub.s32 2, %v272
    %v274 = vrot.slane %v29, %v273
    %v275 = vmul.f32 %v245, %v274
    %v276 = vmul.f32 %v249, %v274
    %v277 = vmul.f32 %v253, %v274
    %v278 = vmul.f32 %v257, %v274
    %v279 = vmul.f32 %v261, %v274
    %v280 = vmul.f32 %v265, %v274
    %v281 = vmul.f32 %v269, %v274
    %v282 = vadd.f32 %v236, %v275
    %v283 = vadd.f32 %v237, %v276
    %v284 = vadd.f32 %v238, %v277
    %v285 = vadd.f32 %v239, %v278
    %v286 = vadd.f32 %v240, %v279
    %v287 = vadd.f32 %v241, %v280
    %v288 = vadd.f32 %v242, %v281
    %289 = vset.pattern.permute.xlu0 3
    %290 = vperm.xlu0 %289, %v132
    %v291 = vpop.permute.xlu0 %290
    %293 = vset.pattern.permute.xlu0 3
    %294 = vperm.xlu0 %293, %v133
    %v295 = vpop.permute.xlu0 %294
    %297 = vset.pattern.permute.xlu0 3
    %298 = vperm.xlu0 %297, %v134
    %v299 = vpop.permute.xlu0 %298
    %301 = vset.pattern.permute.xlu0 3
    %302 = vperm.xlu0 %301, %v135
    %v303 = vpop.permute.xlu0 %302
    %305 = vset.pattern.permute.xlu0 3
    %306 = vperm.xlu0 %305, %v136
    %v307 = vpop.permute.xlu0 %306
    %309 = vset.pattern.permute.xlu0 3
    %310 = vperm.xlu0 %309, %v137
    %v311 = vpop.permute.xlu0 %310
    %313 = vset.pattern.permute.xlu0 3
    %314 = vperm.xlu0 %313, %v138
    %v315 = vpop.permute.xlu0 %314
    %v317 = vlaneseq
    %v318 = vshrl.u32 %v317, 7
    %v319 = vsub.s32 3, %v318
    %v320 = vrot.slane %v29, %v319
    %v321 = vmul.f32 %v291, %v320
    %v322 = vmul.f32 %v295, %v320
    %v323 = vmul.f32 %v299, %v320
    %v324 = vmul.f32 %v303, %v320
    %v325 = vmul.f32 %v307, %v320
    %v326 = vmul.f32 %v311, %v320
    %v327 = vmul.f32 %v315, %v320
    %v328 = vadd.f32 %v282, %v321
    %v329 = vadd.f32 %v283, %v322
    %v330 = vadd.f32 %v284, %v323
    %v331 = vadd.f32 %v285, %v324
    %v332 = vadd.f32 %v286, %v325
    %v333 = vadd.f32 %v287, %v326
    %v334 = vadd.f32 %v288, %v327
    %335 = vset.pattern.permute.xlu0 4
    %336 = vperm.xlu0 %335, %v132
    %v337 = vpop.permute.xlu0 %336
    %339 = vset.pattern.permute.xlu0 4
    %340 = vperm.xlu0 %339, %v133
    %v341 = vpop.permute.xlu0 %340
    %343 = vset.pattern.permute.xlu0 4
    %344 = vperm.xlu0 %343, %v134
    %v345 = vpop.permute.xlu0 %344
    %347 = vset.pattern.permute.xlu0 4
    %348 = vperm.xlu0 %347, %v135
    %v349 = vpop.permute.xlu0 %348
    %351 = vset.pattern.permute.xlu0 4
    %352 = vperm.xlu0 %351, %v136
    %v353 = vpop.permute.xlu0 %352
    %355 = vset.pattern.permute.xlu0 4
    %356 = vperm.xlu0 %355, %v137
    %v357 = vpop.permute.xlu0 %356
    %359 = vset.pattern.permute.xlu0 4
    %360 = vperm.xlu0 %359, %v138
    %v361 = vpop.permute.xlu0 %360
    %v363 = vlaneseq
    %v364 = vshrl.u32 %v363, 7
    %v365 = vsub.s32 4, %v364
    %v366 = vrot.slane %v29, %v365
    %v367 = vmul.f32 %v337, %v366
    %v368 = vmul.f32 %v341, %v366
    %v369 = vmul.f32 %v345, %v366
    %v370 = vmul.f32 %v349, %v366
    %v371 = vmul.f32 %v353, %v366
    %v372 = vmul.f32 %v357, %v366
    %v373 = vmul.f32 %v361, %v366
    %v374 = vadd.f32 %v328, %v367
    %v375 = vadd.f32 %v329, %v368
    %v376 = vadd.f32 %v330, %v369
    %v377 = vadd.f32 %v331, %v370
    %v378 = vadd.f32 %v332, %v371
    %v379 = vadd.f32 %v333, %v372
    %v380 = vadd.f32 %v334, %v373
    %381 = vset.pattern.permute.xlu0 5
    %382 = vperm.xlu0 %381, %v132
    %v383 = vpop.permute.xlu0 %382
    %385 = vset.pattern.permute.xlu0 5
    %386 = vperm.xlu0 %385, %v133
    %v387 = vpop.permute.xlu0 %386
    %389 = vset.pattern.permute.xlu0 5
    %390 = vperm.xlu0 %389, %v134
    %v391 = vpop.permute.xlu0 %390
    %393 = vset.pattern.permute.xlu0 5
    %394 = vperm.xlu0 %393, %v135
    %v395 = vpop.permute.xlu0 %394
    %397 = vset.pattern.permute.xlu0 5
    %398 = vperm.xlu0 %397, %v136
    %v399 = vpop.permute.xlu0 %398
    %401 = vset.pattern.permute.xlu0 5
    %402 = vperm.xlu0 %401, %v137
    %v403 = vpop.permute.xlu0 %402
    %405 = vset.pattern.permute.xlu0 5
    %406 = vperm.xlu0 %405, %v138
    %v407 = vpop.permute.xlu0 %406
    %v409 = vlaneseq
    %v410 = vshrl.u32 %v409, 7
    %v411 = vsub.s32 5, %v410
    %v412 = vrot.slane %v29, %v411
    %v413 = vmul.f32 %v383, %v412
    %v414 = vmul.f32 %v387, %v412
    %v415 = vmul.f32 %v391, %v412
    %v416 = vmul.f32 %v395, %v412
    %v417 = vmul.f32 %v399, %v412
    %v418 = vmul.f32 %v403, %v412
    %v419 = vmul.f32 %v407, %v412
    %v420 = vadd.f32 %v374, %v413
    %v421 = vadd.f32 %v375, %v414
    %v422 = vadd.f32 %v376, %v415
    %v423 = vadd.f32 %v377, %v416
    %v424 = vadd.f32 %v378, %v417
    %v425 = vadd.f32 %v379, %v418
    %v426 = vadd.f32 %v380, %v419
    %427 = vset.pattern.permute.xlu0 6
    %428 = vperm.xlu0 %427, %v132
    %v429 = vpop.permute.xlu0 %428
    %431 = vset.pattern.permute.xlu0 6
    %432 = vperm.xlu0 %431, %v133
    %v433 = vpop.permute.xlu0 %432
    %435 = vset.pattern.permute.xlu0 6
    %436 = vperm.xlu0 %435, %v134
    %v437 = vpop.permute.xlu0 %436
    %439 = vset.pattern.permute.xlu0 6
    %440 = vperm.xlu0 %439, %v135
    %v441 = vpop.permute.xlu0 %440
    %443 = vset.pattern.permute.xlu0 6
    %444 = vperm.xlu0 %443, %v136
    %v445 = vpop.permute.xlu0 %444
    %447 = vset.pattern.permute.xlu0 6
    %448 = vperm.xlu0 %447, %v137
    %v449 = vpop.permute.xlu0 %448
    %451 = vset.pattern.permute.xlu0 6
    %452 = vperm.xlu0 %451, %v138
    %v453 = vpop.permute.xlu0 %452
    %v455 = vlaneseq
    %v456 = vshrl.u32 %v455, 7
    %v457 = vsub.s32 6, %v456
    %v458 = vrot.slane %v29, %v457
    %v459 = vmul.f32 %v429, %v458
    %v460 = vmul.f32 %v433, %v458
    %v461 = vmul.f32 %v437, %v458
    %v462 = vmul.f32 %v441, %v458
    %v463 = vmul.f32 %v445, %v458
    %v464 = vmul.f32 %v449, %v458
    %v465 = vmul.f32 %v453, %v458
    %v466 = vadd.f32 %v420, %v459
    %v467 = vadd.f32 %v421, %v460
    %v468 = vadd.f32 %v422, %v461
    %v469 = vadd.f32 %v423, %v462
    %v470 = vadd.f32 %v424, %v463
    %v471 = vadd.f32 %v425, %v464
    %v472 = vadd.f32 %v426, %v465
    %473 = vset.pattern.permute.xlu0 7
    %474 = vperm.xlu0 %473, %v132
    %v475 = vpop.permute.xlu0 %474
    %477 = vset.pattern.permute.xlu0 7
    %478 = vperm.xlu0 %477, %v133
    %v479 = vpop.permute.xlu0 %478
    %481 = vset.pattern.permute.xlu0 7
    %482 = vperm.xlu0 %481, %v134
    %v483 = vpop.permute.xlu0 %482
    %485 = vset.pattern.permute.xlu0 7
    %486 = vperm.xlu0 %485, %v135
    %v487 = vpop.permute.xlu0 %486
    %489 = vset.pattern.permute.xlu0 7
    %490 = vperm.xlu0 %489, %v136
    %v491 = vpop.permute.xlu0 %490
    %493 = vset.pattern.permute.xlu0 7
    %494 = vperm.xlu0 %493, %v137
    %v495 = vpop.permute.xlu0 %494
    %497 = vset.pattern.permute.xlu0 7
    %498 = vperm.xlu0 %497, %v138
    %v499 = vpop.permute.xlu0 %498
    %v501 = vlaneseq
    %v502 = vshrl.u32 %v501, 7
    %v503 = vsub.s32 7, %v502
    %v504 = vrot.slane %v29, %v503
    %v505 = vmul.f32 %v475, %v504
    %v506 = vmul.f32 %v479, %v504
    %v507 = vmul.f32 %v483, %v504
    %v508 = vmul.f32 %v487, %v504
    %v509 = vmul.f32 %v491, %v504
    %v510 = vmul.f32 %v495, %v504
    %v511 = vmul.f32 %v499, %v504
    %v512 = vadd.f32 %v466, %v505
    %v513 = vadd.f32 %v467, %v506
    %v514 = vadd.f32 %v468, %v507
    %v515 = vadd.f32 %v469, %v508
    %v516 = vadd.f32 %v470, %v509
    %v517 = vadd.f32 %v471, %v510
    %v518 = vadd.f32 %v472, %v511
    %v519 = vmax.f32 %v512, 0.0
    %v520 = vmax.f32 %v513, 0.0
    %v521 = vmax.f32 %v514, 0.0
    %v522 = vmax.f32 %v515, 0.0
    %v523 = vmax.f32 %v516, 0.0
    %v524 = vmax.f32 %v517, 0.0
    %v525 = vmax.f32 %v518, 0.0
    %v526 = vpack.c.bf16 %v520, %v519
    %v527 = vpack.c.bf16 %v522, %v521
    %v528 = vpack.c.bf16 %v524, %v523
    %v529 = vpack.c.bf16 %v525, %v525
    %v530 = vlaneseq
    %v531 = vshrl.u32 %v530, 7
    %v532 = vsub.s32 1, %v531
    %v533 = vrot.slane %v30, %v532
    %v550 = vunpack.c.l.b16 %v36
    %v551 = vunpack.c.l.b16 %v37
    %v552 = vunpack.c.l.b16 %v38
    %v553 = vunpack.c.l.b16 %v39
    %v554 = vunpack.c.l.b16 %v40
    %v555 = vunpack.c.l.b16 %v41
    %v556 = vunpack.c.l.b16 %v42
    %v557 = vunpack.c.l.b16 %v43
    %v558 = vunpack.c.l.b16 %v44
    %v559 = vunpack.c.l.b16 %v45
    %v560 = vunpack.c.l.b16 %v46
    %v561 = vunpack.c.l.b16 %v47
    %v562 = vunpack.c.l.b16 %v48
    %v563 = vunpack.c.l.b16 %v49
    %v564 = vunpack.c.l.b16 %v50
    %v565 = vunpack.c.l.b16 %v51
    %v566 = vpack.c.b16 %v551, %v550
    %v567 = vpack.c.b16 %v553, %v552
    %v568 = vpack.c.b16 %v555, %v554
    %v569 = vpack.c.b16 %v557, %v556
    %v570 = vpack.c.b16 %v559, %v558
    %v571 = vpack.c.b16 %v561, %v560
    %v572 = vpack.c.b16 %v563, %v562
    %v573 = vpack.c.b16 %v565, %v564
    %582 = vmatprep.subr.bf16.mxu0 0
    %583 = vmatpush1.bf16.msra.mxu0 %v566
    %584 = vmatprep.subr.bf16.mxu0 0
    %585 = vmatpush1.bf16.msra.mxu0 %v567
    %586 = vmatprep.subr.bf16.mxu0 0
    %587 = vmatpush1.bf16.msra.mxu0 %v568
    %588 = vmatprep.subr.bf16.mxu0 0
    %589 = vmatpush1.bf16.msra.mxu0 %v569
    %590 = vmatprep.subr.bf16.mxu0 0
    %591 = vmatpush1.bf16.msra.mxu0 %v570
    %592 = vmatprep.subr.bf16.mxu0 0
    %593 = vmatpush1.bf16.msra.mxu0 %v571
    %594 = vmatprep.subr.bf16.mxu0 0
    %595 = vmatpush1.bf16.msra.mxu0 %v572
    %596 = vmatprep.subr.bf16.mxu0 0
    %597 = vmatpush1.bf16.msra.mxu0 %v573
    %598 = vmatprep.subr.bf16.mxu0 0
    %599 = vmatpush1.bf16.msra.mxu0 0
    %600 = vmatprep.subr.bf16.mxu0 0
    %601 = vmatpush1.bf16.msra.mxu0 0
    %602 = vmatprep.subr.bf16.mxu0 0
    %603 = vmatpush1.bf16.msra.mxu0 0
    %604 = vmatprep.subr.bf16.mxu0 0
    %605 = vmatpush1.bf16.msra.mxu0 0
    %606 = vmatprep.subr.bf16.mxu0 0
    %607 = vmatpush1.bf16.msra.mxu0 0
    %608 = vmatprep.subr.bf16.mxu0 0
    %609 = vmatpush1.bf16.msra.mxu0 0
    %610 = vmatprep.subr.bf16.mxu0 0
    %611 = vmatpush1.bf16.msra.mxu0 0
    %612 = vmatprep.subr.bf16.mxu0 0
    %613 = vmatpush1.bf16.msra.mxu0 0
    %614 = vmatprep.mubr.bf16.mxu0 0
    %615 = vmatmul.mubr.bf16.gmra.mrb[0].mxu0 %v526
    %v616 = vpop.f32.mrb[0].mxu0
    %v617 = vadd.f32 %v533, %v616
    %v618 = vpop.f32.mrb[0].mxu0
    %v619 = vpop.f32.mrb[0].mxu0
    %v620 = vadd.f32 %v533, %v619
    %v621 = vpop.f32.mrb[0].mxu0
    %622 = vmatprep.mubr.bf16.mxu0 0
    %623 = vmatmul.mubr.bf16.gmra.mrb[0].mxu0 %v527
    %v624 = vpop.f32.mrb[0].mxu0
    %v625 = vadd.f32 %v533, %v624
    %v626 = vpop.f32.mrb[0].mxu0
    %v627 = vpop.f32.mrb[0].mxu0
    %v628 = vadd.f32 %v533, %v627
    %v629 = vpop.f32.mrb[0].mxu0
    %630 = vmatprep.mubr.bf16.mxu0 0
    %631 = vmatmul.mubr.bf16.gmra.mrb[0].mxu0 %v528
    %v632 = vpop.f32.mrb[0].mxu0
    %v633 = vadd.f32 %v533, %v632
    %v634 = vpop.f32.mrb[0].mxu0
    %v635 = vpop.f32.mrb[0].mxu0
    %v636 = vadd.f32 %v533, %v635
    %v637 = vpop.f32.mrb[0].mxu0
    %638 = vmatprep.mubr.bf16.mxu0 0
    %639 = vmatmul.mubr.bf16.gmra.mrb[0].mxu0 %v529
    %v640 = vpop.f32.mrb[0].mxu0
    %v641 = vadd.f32 %v533, %v640
    %v642 = vpop.f32.mrb[0].mxu0
    %v643 = vpop.f32.mrb[0].mxu0
    %v644 = vpop.f32.mrb[0].mxu0
    %645 = vdwg.mxu0
    %v646 = vmax.f32 %v617, 0.0
    %v647 = vmax.f32 %v620, 0.0
    %v648 = vmax.f32 %v625, 0.0
    %v649 = vmax.f32 %v628, 0.0
    %v650 = vmax.f32 %v633, 0.0
    %v651 = vmax.f32 %v636, 0.0
    %v652 = vmax.f32 %v641, 0.0
    %v653 = vpack.c.bf16 %v647, %v646
    %v654 = vpack.c.bf16 %v649, %v648
    %v655 = vpack.c.bf16 %v651, %v650
    %v656 = vpack.c.bf16 %v652, %v652
    %v657 = vlaneseq
    %v658 = vshrl.u32 %v657, 7
    %v659 = vsub.s32 2, %v658
    %v660 = vrot.slane %v30, %v659
    %v677 = vunpack.c.l.b16 %v52
    %v678 = vunpack.c.l.b16 %v53
    %v679 = vunpack.c.l.b16 %v54
    %v680 = vunpack.c.l.b16 %v55
    %v681 = vunpack.c.l.b16 %v56
    %v682 = vunpack.c.l.b16 %v57
    %v683 = vunpack.c.l.b16 %v58
    %v684 = vunpack.c.l.b16 %v59
    %v685 = vunpack.c.l.b16 %v60
    %v686 = vunpack.c.l.b16 %v61
    %v687 = vunpack.c.l.b16 %v62
    %v688 = vunpack.c.l.b16 %v63
    %v689 = vunpack.c.l.b16 %v64
    %v690 = vunpack.c.l.b16 %v65
    %v691 = vunpack.c.l.b16 %v66
    %v692 = vunpack.c.l.b16 %v67
    %v693 = vpack.c.b16 %v678, %v677
    %v694 = vpack.c.b16 %v680, %v679
    %v695 = vpack.c.b16 %v682, %v681
    %v696 = vpack.c.b16 %v684, %v683
    %v697 = vpack.c.b16 %v686, %v685
    %v698 = vpack.c.b16 %v688, %v687
    %v699 = vpack.c.b16 %v690, %v689
    %v700 = vpack.c.b16 %v692, %v691
    %709 = vmatprep.subr.bf16.mxu0 0
    %710 = vmatpush1.bf16.msra.mxu0 %v693
    %711 = vmatprep.subr.bf16.mxu0 0
    %712 = vmatpush1.bf16.msra.mxu0 %v694
    %713 = vmatprep.subr.bf16.mxu0 0
    %714 = vmatpush1.bf16.msra.mxu0 %v695
    %715 = vmatprep.subr.bf16.mxu0 0
    %716 = vmatpush1.bf16.msra.mxu0 %v696
    %717 = vmatprep.subr.bf16.mxu0 0
    %718 = vmatpush1.bf16.msra.mxu0 %v697
    %719 = vmatprep.subr.bf16.mxu0 0
    %720 = vmatpush1.bf16.msra.mxu0 %v698
    %721 = vmatprep.subr.bf16.mxu0 0
    %722 = vmatpush1.bf16.msra.mxu0 %v699
    %723 = vmatprep.subr.bf16.mxu0 0
    %724 = vmatpush1.bf16.msra.mxu0 %v700
    %725 = vmatprep.subr.bf16.mxu0 0
    %726 = vmatpush1.bf16.msra.mxu0 0
    %727 = vmatprep.subr.bf16.mxu0 0
    %728 = vmatpush1.bf16.msra.mxu0 0
    %729 = vmatprep.subr.bf16.mxu0 0
    %730 = vmatpush1.bf16.msra.mxu0 0
    %731 = vmatprep.subr.bf16.mxu0 0
    %732 = vmatpush1.bf16.msra.mxu0 0
    %733 = vmatprep.subr.bf16.mxu0 0
    %734 = vmatpush1.bf16.msra.mxu0 0
    %735 = vmatprep.subr.bf16.mxu0 0
    %736 = vmatpush1.bf16.msra.mxu0 0
    %737 = vmatprep.subr.bf16.mxu0 0
    %738 = vmatpush1.bf16.msra.mxu0 0
    %739 = vmatprep.subr.bf16.mxu0 0
    %740 = vmatpush1.bf16.msra.mxu0 0
    %741 = vmatprep.mubr.bf16.mxu0 0
    %742 = vmatmul.mubr.bf16.gmra.mrb[0].mxu0 %v653
    %v743 = vpop.f32.mrb[0].mxu0
    %v744 = vadd.f32 %v660, %v743
    %v745 = vpop.f32.mrb[0].mxu0
    %v746 = vpop.f32.mrb[0].mxu0
    %v747 = vadd.f32 %v660, %v746
    %v748 = vpop.f32.mrb[0].mxu0
    %749 = vmatprep.mubr.bf16.mxu0 0
    %750 = vmatmul.mubr.bf16.gmra.mrb[0].mxu0 %v654
    %v751 = vpop.f32.mrb[0].mxu0
    %v752 = vadd.f32 %v660, %v751
    %v753 = vpop.f32.mrb[0].mxu0
    %v754 = vpop.f32.mrb[0].mxu0
    %v755 = vadd.f32 %v660, %v754
    %v756 = vpop.f32.mrb[0].mxu0
    %757 = vmatprep.mubr.bf16.mxu0 0
    %758 = vmatmul.mubr.bf16.gmra.mrb[0].mxu0 %v655
    %v759 = vpop.f32.mrb[0].mxu0
    %v760 = vadd.f32 %v660, %v759
    %v761 = vpop.f32.mrb[0].mxu0
    %v762 = vpop.f32.mrb[0].mxu0
    %v763 = vadd.f32 %v660, %v762
    %v764 = vpop.f32.mrb[0].mxu0
    %765 = vmatprep.mubr.bf16.mxu0 0
    %766 = vmatmul.mubr.bf16.gmra.mrb[0].mxu0 %v656
    %v767 = vpop.f32.mrb[0].mxu0
    %v768 = vadd.f32 %v660, %v767
    %v769 = vpop.f32.mrb[0].mxu0
    %v770 = vpop.f32.mrb[0].mxu0
    %v771 = vpop.f32.mrb[0].mxu0
    %772 = vdwg.mxu0
    %v773 = vmul.f32 %v133, %v133
    %v774 = vmul.f32 %v134, %v134
    %v775 = vmul.f32 %v135, %v135
    %v776 = vmul.f32 %v136, %v136
    %v777 = vmul.f32 %v137, %v137
    %v778 = vmul.f32 %v138, %v138
    %785 = vrot.lane.b32.xlu0 %v773, 124
    %v786 = vpop.permute.xlu0 %785
    %787 = vrot.lane.b32.xlu0 %v774, 124
    %v788 = vpop.permute.xlu0 %787
    %789 = vrot.lane.b32.xlu0 %v775, 124
    %v790 = vpop.permute.xlu0 %789
    %791 = vrot.lane.b32.xlu0 %v776, 124
    %v792 = vpop.permute.xlu0 %791
    %793 = vrot.lane.b32.xlu0 %v777, 124
    %v794 = vpop.permute.xlu0 %793
    %795 = vrot.lane.b32.xlu0 %v778, 124
    %v796 = vpop.permute.xlu0 %795
    %vm803 = vcmask 31744
    %v804 = vsel %vm803, %v786, 0.0
    %805 = vadd.xlane.f32.xlu0 %v804
    %v806 = vpop.xlane.xlu0 %805
    %v807 = vsel %vm803, %v788, 0.0
    %808 = vadd.xlane.f32.xlu0 %v807
    %v809 = vpop.xlane.xlu0 %808
    %v810 = vsel %vm803, %v790, 0.0
    %811 = vadd.xlane.f32.xlu0 %v810
    %v812 = vpop.xlane.xlu0 %811
    %v813 = vsel %vm803, %v792, 0.0
    %814 = vadd.xlane.f32.xlu0 %v813
    %v815 = vpop.xlane.xlu0 %814
    %v816 = vsel %vm803, %v794, 0.0
    %817 = vadd.xlane.f32.xlu0 %v816
    %v818 = vpop.xlane.xlu0 %817
    %v819 = vsel %vm803, %v796, 0.0
    %820 = vadd.xlane.f32.xlu0 %v819
    %v821 = vpop.xlane.xlu0 %820
    %v822 = vrsqrt.pop %v806
    %v823 = vmul.f32 %v806, %v822
    %vm824 = vcmp.eq.f32.partialorder %v806, inf
    %v825 = vsel %vm824, %v806, %v823
    %vm826 = vcmp.eq.f32.partialorder %v806, 0.0
    %v827 = vand.u32 %v806, 2147483648
    %v828 = vsel %vm826, %v827, %v825
    %v829 = vrsqrt.pop %v809
    %v830 = vmul.f32 %v809, %v829
    %vm831 = vcmp.eq.f32.partialorder %v809, inf
    %v832 = vsel %vm831, %v809, %v830
    %vm833 = vcmp.eq.f32.partialorder %v809, 0.0
    %v834 = vand.u32 %v809, 2147483648
    %v835 = vsel %vm833, %v834, %v832
    %v836 = vrsqrt.pop %v812
    %v837 = vmul.f32 %v812, %v836
    %vm838 = vcmp.eq.f32.partialorder %v812, inf
    %v839 = vsel %vm838, %v812, %v837
    %vm840 = vcmp.eq.f32.partialorder %v812, 0.0
    %v841 = vand.u32 %v812, 2147483648
    %v842 = vsel %vm840, %v841, %v839
    %v843 = vrsqrt.pop %v815
    %v844 = vmul.f32 %v815, %v843
    %vm845 = vcmp.eq.f32.partialorder %v815, inf
    %v846 = vsel %vm845, %v815, %v844
    %vm847 = vcmp.eq.f32.partialorder %v815, 0.0
    %v848 = vand.u32 %v815, 2147483648
    %v849 = vsel %vm847, %v848, %v846
    %v850 = vrsqrt.pop %v818
    %v851 = vmul.f32 %v818, %v850
    %vm852 = vcmp.eq.f32.partialorder %v818, inf
    %v853 = vsel %vm852, %v818, %v851
    %vm854 = vcmp.eq.f32.partialorder %v818, 0.0
    %v855 = vand.u32 %v818, 2147483648
    %v856 = vsel %vm854, %v855, %v853
    %v857 = vrsqrt.pop %v821
    %v858 = vmul.f32 %v821, %v857
    %vm859 = vcmp.eq.f32.partialorder %v821, inf
    %v860 = vsel %vm859, %v821, %v858
    %vm861 = vcmp.eq.f32.partialorder %v821, 0.0
    %v862 = vand.u32 %v821, 2147483648
    %v863 = vsel %vm861, %v862, %v860
    %v864 = vtanh.pop %v828
    %v865 = vtanh.pop %v835
    %v866 = vtanh.pop %v842
    %v867 = vtanh.pop %v849
    %v868 = vtanh.pop %v856
    %v869 = vtanh.pop %v863
    %v870 = vmul.f32 %v747, %v864
    %v871 = vmul.f32 %v752, %v865
    %v872 = vmul.f32 %v755, %v866
    %v873 = vmul.f32 %v760, %v867
    %v874 = vmul.f32 %v763, %v868
    %v875 = vmul.f32 %v768, %v869
    %vm876 = vcmask 261120
    %v877 = vsel %vm876, %v870, 0.0
    %v878 = vsel %vm876, %v871, 0.0
    %v879 = vadd.f32 %v877, %v878
    %v880 = vrot.slane %v879, 4
    %v881 = vadd.f32 %v879, %v880
    %v882 = vrot.slane %v881, 2
    %v883 = vadd.f32 %v881, %v882
    %v884 = vrot.slane %v883, 1
    %v885 = vadd.f32 %v883, %v884
    %v886 = vrcp.pop 16.0
    %v887 = vmul.f32 %v885, %v886
    %v888 = vmul.f32 %v887, 0.075
    %890 = vset.pattern.permute.xlu0 0
    %891 = vperm.xlu0 %890, %v139
    %v892 = vpop.permute.xlu0 %891
    %v894 = vlaneseq
    %v895 = vshrl.u32 %v894, 7
    %v896 = vsub.s32 0, %v895
    %v897 = vrot.slane %v32, %v896
    %v898 = vlaneseq
    %v899 = vshrl.u32 %v898, 7
    %v900 = vsub.s32 0, %v899
    %v901 = vrot.slane %v33, %v900
    %v902 = vmul.f32 %v892, %v897
    %v903 = vmul.f32 %v892, %v901
    %v904 = vlaneseq
    %v905 = vshrl.u32 %v904, 7
    %v906 = vsub.s32 4, %v905
    %v907 = vrot.slane %v30, %v906
    %v908 = vlaneseq
    %v909 = vshrl.u32 %v908, 7
    %v910 = vsub.s32 4, %v909
    %v911 = vrot.slane %v31, %v910
    %v912 = vadd.f32 %v907, %v902
    %v913 = vadd.f32 %v911, %v903
    %914 = vset.pattern.permute.xlu0 1
    %915 = vperm.xlu0 %914, %v139
    %v916 = vpop.permute.xlu0 %915
    %v918 = vlaneseq
    %v919 = vshrl.u32 %v918, 7
    %v920 = vsub.s32 1, %v919
    %v921 = vrot.slane %v32, %v920
    %v922 = vlaneseq
    %v923 = vshrl.u32 %v922, 7
    %v924 = vsub.s32 1, %v923
    %v925 = vrot.slane %v33, %v924
    %v926 = vmul.f32 %v916, %v921
    %v927 = vmul.f32 %v916, %v925
    %v928 = vadd.f32 %v912, %v926
    %v929 = vadd.f32 %v913, %v927
    %930 = vset.pattern.permute.xlu0 2
    %931 = vperm.xlu0 %930, %v139
    %v932 = vpop.permute.xlu0 %931
    %v934 = vlaneseq
    %v935 = vshrl.u32 %v934, 7
    %v936 = vsub.s32 2, %v935
    %v937 = vrot.slane %v32, %v936
    %v938 = vlaneseq
    %v939 = vshrl.u32 %v938, 7
    %v940 = vsub.s32 2, %v939
    %v941 = vrot.slane %v33, %v940
    %v942 = vmul.f32 %v932, %v937
    %v943 = vmul.f32 %v932, %v941
    %v944 = vadd.f32 %v928, %v942
    %v945 = vadd.f32 %v929, %v943
    %946 = vset.pattern.permute.xlu0 3
    %947 = vperm.xlu0 %946, %v139
    %v948 = vpop.permute.xlu0 %947
    %v950 = vlaneseq
    %v951 = vshrl.u32 %v950, 7
    %v952 = vsub.s32 3, %v951
    %v953 = vrot.slane %v32, %v952
    %v954 = vlaneseq
    %v955 = vshrl.u32 %v954, 7
    %v956 = vsub.s32 3, %v955
    %v957 = vrot.slane %v33, %v956
    %v958 = vmul.f32 %v948, %v953
    %v959 = vmul.f32 %v948, %v957
    %v960 = vadd.f32 %v944, %v958
    %v961 = vadd.f32 %v945, %v959
    %962 = vset.pattern.permute.xlu0 4
    %963 = vperm.xlu0 %962, %v139
    %v964 = vpop.permute.xlu0 %963
    %v966 = vlaneseq
    %v967 = vshrl.u32 %v966, 7
    %v968 = vsub.s32 4, %v967
    %v969 = vrot.slane %v32, %v968
    %v970 = vlaneseq
    %v971 = vshrl.u32 %v970, 7
    %v972 = vsub.s32 4, %v971
    %v973 = vrot.slane %v33, %v972
    %v974 = vmul.f32 %v964, %v969
    %v975 = vmul.f32 %v964, %v973
    %v976 = vadd.f32 %v960, %v974
    %v977 = vadd.f32 %v961, %v975
    %978 = vset.pattern.permute.xlu0 5
    %979 = vperm.xlu0 %978, %v139
    %v980 = vpop.permute.xlu0 %979
    %v982 = vlaneseq
    %v983 = vshrl.u32 %v982, 7
    %v984 = vsub.s32 5, %v983
    %v985 = vrot.slane %v32, %v984
    %v986 = vlaneseq
    %v987 = vshrl.u32 %v986, 7
    %v988 = vsub.s32 5, %v987
    %v989 = vrot.slane %v33, %v988
    %v990 = vmul.f32 %v980, %v985
    %v991 = vmul.f32 %v980, %v989
    %v992 = vadd.f32 %v976, %v990
    %v993 = vadd.f32 %v977, %v991
    %994 = vset.pattern.permute.xlu0 6
    %995 = vperm.xlu0 %994, %v139
    %v996 = vpop.permute.xlu0 %995
    %v998 = vlaneseq
    %v999 = vshrl.u32 %v998, 7
    %v1000 = vsub.s32 6, %v999
    %v1001 = vrot.slane %v32, %v1000
    %v1002 = vlaneseq
    %v1003 = vshrl.u32 %v1002, 7
    %v1004 = vsub.s32 6, %v1003
    %v1005 = vrot.slane %v33, %v1004
    %v1006 = vmul.f32 %v996, %v1001
    %v1007 = vmul.f32 %v996, %v1005
    %v1008 = vadd.f32 %v992, %v1006
    %v1009 = vadd.f32 %v993, %v1007
    %1010 = vset.pattern.permute.xlu0 7
    %1011 = vperm.xlu0 %1010, %v139
    %v1012 = vpop.permute.xlu0 %1011
    %v1014 = vlaneseq
    %v1015 = vshrl.u32 %v1014, 7
    %v1016 = vsub.s32 7, %v1015
    %v1017 = vrot.slane %v32, %v1016
    %v1018 = vlaneseq
    %v1019 = vshrl.u32 %v1018, 7
    %v1020 = vsub.s32 7, %v1019
    %v1021 = vrot.slane %v33, %v1020
    %v1022 = vmul.f32 %v1012, %v1017
    %v1023 = vmul.f32 %v1012, %v1021
    %v1024 = vadd.f32 %v1008, %v1022
    %v1025 = vadd.f32 %v1009, %v1023
    %1026 = vset.pattern.permute.xlu0 8
    %1027 = vperm.xlu0 %1026, %v139
    %v1028 = vpop.permute.xlu0 %1027
    %v1030 = vlaneseq
    %v1031 = vshrl.u32 %v1030, 7
    %v1032 = vsub.s32 0, %v1031
    %v1033 = vrot.slane %v34, %v1032
    %v1034 = vlaneseq
    %v1035 = vshrl.u32 %v1034, 7
    %v1036 = vsub.s32 0, %v1035
    %v1037 = vrot.slane %v35, %v1036
    %v1038 = vmul.f32 %v1028, %v1033
    %v1039 = vmul.f32 %v1028, %v1037
    %v1040 = vadd.f32 %v1024, %v1038
    %v1041 = vadd.f32 %v1025, %v1039
    %1042 = vset.pattern.permute.xlu0 9
    %1043 = vperm.xlu0 %1042, %v139
    %v1044 = vpop.permute.xlu0 %1043
    %v1046 = vlaneseq
    %v1047 = vshrl.u32 %v1046, 7
    %v1048 = vsub.s32 1, %v1047
    %v1049 = vrot.slane %v34, %v1048
    %v1050 = vlaneseq
    %v1051 = vshrl.u32 %v1050, 7
    %v1052 = vsub.s32 1, %v1051
    %v1053 = vrot.slane %v35, %v1052
    %v1054 = vmul.f32 %v1044, %v1049
    %v1055 = vmul.f32 %v1044, %v1053
    %v1056 = vadd.f32 %v1040, %v1054
    %v1057 = vadd.f32 %v1041, %v1055
    %1058 = vset.pattern.permute.xlu0 10
    %1059 = vperm.xlu0 %1058, %v139
    %v1060 = vpop.permute.xlu0 %1059
    %v1062 = vlaneseq
    %v1063 = vshrl.u32 %v1062, 7
    %v1064 = vsub.s32 2, %v1063
    %v1065 = vrot.slane %v34, %v1064
    %v1066 = vlaneseq
    %v1067 = vshrl.u32 %v1066, 7
    %v1068 = vsub.s32 2, %v1067
    %v1069 = vrot.slane %v35, %v1068
    %v1070 = vmul.f32 %v1060, %v1065
    %v1071 = vmul.f32 %v1060, %v1069
    %v1072 = vadd.f32 %v1056, %v1070
    %v1073 = vadd.f32 %v1057, %v1071
    %1074 = vset.pattern.permute.xlu0 11
    %1075 = vperm.xlu0 %1074, %v139
    %v1076 = vpop.permute.xlu0 %1075
    %v1078 = vlaneseq
    %v1079 = vshrl.u32 %v1078, 7
    %v1080 = vsub.s32 3, %v1079
    %v1081 = vrot.slane %v34, %v1080
    %v1082 = vlaneseq
    %v1083 = vshrl.u32 %v1082, 7
    %v1084 = vsub.s32 3, %v1083
    %v1085 = vrot.slane %v35, %v1084
    %v1086 = vmul.f32 %v1076, %v1081
    %v1087 = vmul.f32 %v1076, %v1085
    %v1088 = vadd.f32 %v1072, %v1086
    %v1089 = vadd.f32 %v1073, %v1087
    %1090 = vset.pattern.permute.xlu0 12
    %1091 = vperm.xlu0 %1090, %v139
    %v1092 = vpop.permute.xlu0 %1091
    %v1094 = vlaneseq
    %v1095 = vshrl.u32 %v1094, 7
    %v1096 = vsub.s32 4, %v1095
    %v1097 = vrot.slane %v34, %v1096
    %v1098 = vlaneseq
    %v1099 = vshrl.u32 %v1098, 7
    %v1100 = vsub.s32 4, %v1099
    %v1101 = vrot.slane %v35, %v1100
    %v1102 = vmul.f32 %v1092, %v1097
    %v1103 = vmul.f32 %v1092, %v1101
    %v1104 = vadd.f32 %v1088, %v1102
    %v1105 = vadd.f32 %v1089, %v1103
    %1106 = vset.pattern.permute.xlu0 13
    %1107 = vperm.xlu0 %1106, %v139
    %v1108 = vpop.permute.xlu0 %1107
    %v1110 = vlaneseq
    %v1111 = vshrl.u32 %v1110, 7
    %v1112 = vsub.s32 5, %v1111
    %v1113 = vrot.slane %v34, %v1112
    %v1114 = vlaneseq
    %v1115 = vshrl.u32 %v1114, 7
    %v1116 = vsub.s32 5, %v1115
    %v1117 = vrot.slane %v35, %v1116
    %v1118 = vmul.f32 %v1108, %v1113
    %v1119 = vmul.f32 %v1108, %v1117
    %v1120 = vadd.f32 %v1104, %v1118
    %v1121 = vadd.f32 %v1105, %v1119
    %1122 = vset.pattern.permute.xlu0 14
    %1123 = vperm.xlu0 %1122, %v139
    %v1124 = vpop.permute.xlu0 %1123
    %v1126 = vlaneseq
    %v1127 = vshrl.u32 %v1126, 7
    %v1128 = vsub.s32 6, %v1127
    %v1129 = vrot.slane %v34, %v1128
    %v1130 = vlaneseq
    %v1131 = vshrl.u32 %v1130, 7
    %v1132 = vsub.s32 6, %v1131
    %v1133 = vrot.slane %v35, %v1132
    %v1134 = vmul.f32 %v1124, %v1129
    %v1135 = vmul.f32 %v1124, %v1133
    %v1136 = vadd.f32 %v1120, %v1134
    %v1137 = vadd.f32 %v1121, %v1135
    %1138 = vset.pattern.permute.xlu0 15
    %1139 = vperm.xlu0 %1138, %v139
    %v1140 = vpop.permute.xlu0 %1139
    %v1142 = vlaneseq
    %v1143 = vshrl.u32 %v1142, 7
    %v1144 = vsub.s32 7, %v1143
    %v1145 = vrot.slane %v34, %v1144
    %v1146 = vlaneseq
    %v1147 = vshrl.u32 %v1146, 7
    %v1148 = vsub.s32 7, %v1147
    %v1149 = vrot.slane %v35, %v1148
    %v1150 = vmul.f32 %v1140, %v1145
    %v1151 = vmul.f32 %v1140, %v1149
    %v1152 = vadd.f32 %v1136, %v1150
    %v1153 = vadd.f32 %v1137, %v1151
    %v1154 = vmax.f32 %v1152, 0.0
    %v1155 = vmax.f32 %v1153, 0.0
    %v1156 = vpack.c.bf16 %v1154, %v1154
    %v1157 = vpack.c.bf16 %v1155, %v1155
    %v1158 = vlaneseq
    %v1159 = vshrl.u32 %v1158, 7
    %v1160 = vsub.s32 5, %v1159
    %v1161 = vrot.slane %v30, %v1160
    %v1162 = vlaneseq
    %v1163 = vshrl.u32 %v1162, 7
    %v1164 = vsub.s32 5, %v1163
    %v1165 = vrot.slane %v31, %v1164
    %v1198 = vunpack.c.l.b16 %v68
    %v1199 = vunpack.c.h.b16 %v68
    %v1200 = vunpack.c.l.b16 %v69
    %v1201 = vunpack.c.h.b16 %v69
    %v1202 = vunpack.c.l.b16 %v70
    %v1203 = vunpack.c.h.b16 %v70
    %v1204 = vunpack.c.l.b16 %v71
    %v1205 = vunpack.c.h.b16 %v71
    %v1206 = vunpack.c.l.b16 %v72
    %v1207 = vunpack.c.h.b16 %v72
    %v1208 = vunpack.c.l.b16 %v73
    %v1209 = vunpack.c.h.b16 %v73
    %v1210 = vunpack.c.l.b16 %v74
    %v1211 = vunpack.c.h.b16 %v74
    %v1212 = vunpack.c.l.b16 %v75
    %v1213 = vunpack.c.h.b16 %v75
    %v1214 = vunpack.c.l.b16 %v76
    %v1215 = vunpack.c.h.b16 %v76
    %v1216 = vunpack.c.l.b16 %v77
    %v1217 = vunpack.c.h.b16 %v77
    %v1218 = vunpack.c.l.b16 %v78
    %v1219 = vunpack.c.h.b16 %v78
    %v1220 = vunpack.c.l.b16 %v79
    %v1221 = vunpack.c.h.b16 %v79
    %v1222 = vunpack.c.l.b16 %v80
    %v1223 = vunpack.c.h.b16 %v80
    %v1224 = vunpack.c.l.b16 %v81
    %v1225 = vunpack.c.h.b16 %v81
    %v1226 = vunpack.c.l.b16 %v82
    %v1227 = vunpack.c.h.b16 %v82
    %v1228 = vunpack.c.l.b16 %v83
    %v1229 = vunpack.c.h.b16 %v83
    %v1230 = vunpack.c.l.b16 %v84
    %v1231 = vunpack.c.h.b16 %v84
    %v1232 = vunpack.c.l.b16 %v85
    %v1233 = vunpack.c.h.b16 %v85
    %v1234 = vunpack.c.l.b16 %v86
    %v1235 = vunpack.c.h.b16 %v86
    %v1236 = vunpack.c.l.b16 %v87
    %v1237 = vunpack.c.h.b16 %v87
    %v1238 = vunpack.c.l.b16 %v88
    %v1239 = vunpack.c.h.b16 %v88
    %v1240 = vunpack.c.l.b16 %v89
    %v1241 = vunpack.c.h.b16 %v89
    %v1242 = vunpack.c.l.b16 %v90
    %v1243 = vunpack.c.h.b16 %v90
    %v1244 = vunpack.c.l.b16 %v91
    %v1245 = vunpack.c.h.b16 %v91
    %v1246 = vunpack.c.l.b16 %v92
    %v1247 = vunpack.c.h.b16 %v92
    %v1248 = vunpack.c.l.b16 %v93
    %v1249 = vunpack.c.h.b16 %v93
    %v1250 = vunpack.c.l.b16 %v94
    %v1251 = vunpack.c.h.b16 %v94
    %v1252 = vunpack.c.l.b16 %v95
    %v1253 = vunpack.c.h.b16 %v95
    %v1254 = vunpack.c.l.b16 %v96
    %v1255 = vunpack.c.h.b16 %v96
    %v1256 = vunpack.c.l.b16 %v97
    %v1257 = vunpack.c.h.b16 %v97
    %v1258 = vunpack.c.l.b16 %v98
    %v1259 = vunpack.c.h.b16 %v98
    %v1260 = vunpack.c.l.b16 %v99
    %v1261 = vunpack.c.h.b16 %v99
    %v1262 = vpack.c.b16 %v1200, %v1198
    %v1263 = vpack.c.b16 %v1201, %v1199
    %v1264 = vpack.c.b16 %v1204, %v1202
    %v1265 = vpack.c.b16 %v1205, %v1203
    %v1266 = vpack.c.b16 %v1208, %v1206
    %v1267 = vpack.c.b16 %v1209, %v1207
    %v1268 = vpack.c.b16 %v1212, %v1210
    %v1269 = vpack.c.b16 %v1213, %v1211
    %v1270 = vpack.c.b16 %v1216, %v1214
    %v1271 = vpack.c.b16 %v1217, %v1215
    %v1272 = vpack.c.b16 %v1220, %v1218
    %v1273 = vpack.c.b16 %v1221, %v1219
    %v1274 = vpack.c.b16 %v1224, %v1222
    %v1275 = vpack.c.b16 %v1225, %v1223
    %v1276 = vpack.c.b16 %v1228, %v1226
    %v1277 = vpack.c.b16 %v1229, %v1227
    %v1278 = vpack.c.b16 %v1232, %v1230
    %v1279 = vpack.c.b16 %v1233, %v1231
    %v1280 = vpack.c.b16 %v1236, %v1234
    %v1281 = vpack.c.b16 %v1237, %v1235
    %v1282 = vpack.c.b16 %v1240, %v1238
    %v1283 = vpack.c.b16 %v1241, %v1239
    %v1284 = vpack.c.b16 %v1244, %v1242
    %v1285 = vpack.c.b16 %v1245, %v1243
    %v1286 = vpack.c.b16 %v1248, %v1246
    %v1287 = vpack.c.b16 %v1249, %v1247
    %v1288 = vpack.c.b16 %v1252, %v1250
    %v1289 = vpack.c.b16 %v1253, %v1251
    %v1290 = vpack.c.b16 %v1256, %v1254
    %v1291 = vpack.c.b16 %v1257, %v1255
    %v1292 = vpack.c.b16 %v1260, %v1258
    %v1293 = vpack.c.b16 %v1261, %v1259
    %1326 = vmatprep.subr.bf16.mxu0 %v1263
    %1327 = vmatpush1.bf16.msra.mxu0 %v1262
    %1328 = vmatprep.subr.bf16.mxu0 %v1265
    %1329 = vmatpush1.bf16.msra.mxu0 %v1264
    %1330 = vmatprep.subr.bf16.mxu0 %v1267
    %1331 = vmatpush1.bf16.msra.mxu0 %v1266
    %1332 = vmatprep.subr.bf16.mxu0 %v1269
    %1333 = vmatpush1.bf16.msra.mxu0 %v1268
    %1334 = vmatprep.subr.bf16.mxu0 %v1271
    %1335 = vmatpush1.bf16.msra.mxu0 %v1270
    %1336 = vmatprep.subr.bf16.mxu0 %v1273
    %1337 = vmatpush1.bf16.msra.mxu0 %v1272
    %1338 = vmatprep.subr.bf16.mxu0 %v1275
    %1339 = vmatpush1.bf16.msra.mxu0 %v1274
    %1340 = vmatprep.subr.bf16.mxu0 %v1277
    %1341 = vmatpush1.bf16.msra.mxu0 %v1276
    %1342 = vmatprep.subr.bf16.mxu0 %v1279
    %1343 = vmatpush1.bf16.msra.mxu0 %v1278
    %1344 = vmatprep.subr.bf16.mxu0 %v1281
    %1345 = vmatpush1.bf16.msra.mxu0 %v1280
    %1346 = vmatprep.subr.bf16.mxu0 %v1283
    %1347 = vmatpush1.bf16.msra.mxu0 %v1282
    %1348 = vmatprep.subr.bf16.mxu0 %v1285
    %1349 = vmatpush1.bf16.msra.mxu0 %v1284
    %1350 = vmatprep.subr.bf16.mxu0 %v1287
    %1351 = vmatpush1.bf16.msra.mxu0 %v1286
    %1352 = vmatprep.subr.bf16.mxu0 %v1289
    %1353 = vmatpush1.bf16.msra.mxu0 %v1288
    %1354 = vmatprep.subr.bf16.mxu0 %v1291
    %1355 = vmatpush1.bf16.msra.mxu0 %v1290
    %1356 = vmatprep.subr.bf16.mxu0 %v1293
    %1357 = vmatpush1.bf16.msra.mxu0 %v1292
    %1358 = vmatprep.mubr.bf16.mxu0 %v1157
    %1359 = vmatmul.mubr.bf16.gmra.mrb[0].mxu0 %v1156
    %v1360 = vpop.f32.mrb[0].mxu0
    %v1361 = vadd.f32 %v1161, %v1360
    %v1362 = vpop.f32.mrb[0].mxu0
    %v1363 = vadd.f32 %v1165, %v1362
    %v1364 = vpop.f32.mrb[0].mxu0
    %v1365 = vpop.f32.mrb[0].mxu0
    %1366 = vdwg.mxu0
    %v1367 = vmax.f32 %v1361, 0.0
    %v1368 = vmax.f32 %v1363, 0.0
    %v1369 = vpack.c.bf16 %v1367, %v1367
    %v1370 = vpack.c.bf16 %v1368, %v1368
    %v1371 = vlaneseq
    %v1372 = vshrl.u32 %v1371, 7
    %v1373 = vsub.s32 3, %v1372
    %v1374 = vrot.slane %v30, %v1373
    %v1407 = vunpack.c.l.b16 %v100
    %v1408 = vunpack.c.l.b16 %v101
    %v1409 = vunpack.c.l.b16 %v102
    %v1410 = vunpack.c.l.b16 %v103
    %v1411 = vunpack.c.l.b16 %v104
    %v1412 = vunpack.c.l.b16 %v105
    %v1413 = vunpack.c.l.b16 %v106
    %v1414 = vunpack.c.l.b16 %v107
    %v1415 = vunpack.c.l.b16 %v108
    %v1416 = vunpack.c.l.b16 %v109
    %v1417 = vunpack.c.l.b16 %v110
    %v1418 = vunpack.c.l.b16 %v111
    %v1419 = vunpack.c.l.b16 %v112
    %v1420 = vunpack.c.l.b16 %v113
    %v1421 = vunpack.c.l.b16 %v114
    %v1422 = vunpack.c.l.b16 %v115
    %v1423 = vunpack.c.l.b16 %v116
    %v1424 = vunpack.c.l.b16 %v117
    %v1425 = vunpack.c.l.b16 %v118
    %v1426 = vunpack.c.l.b16 %v119
    %v1427 = vunpack.c.l.b16 %v120
    %v1428 = vunpack.c.l.b16 %v121
    %v1429 = vunpack.c.l.b16 %v122
    %v1430 = vunpack.c.l.b16 %v123
    %v1431 = vunpack.c.l.b16 %v124
    %v1432 = vunpack.c.l.b16 %v125
    %v1433 = vunpack.c.l.b16 %v126
    %v1434 = vunpack.c.l.b16 %v127
    %v1435 = vunpack.c.l.b16 %v128
    %v1436 = vunpack.c.l.b16 %v129
    %v1437 = vunpack.c.l.b16 %v130
    %v1438 = vunpack.c.l.b16 %v131
    %v1439 = vpack.c.b16 %v1408, %v1407
    %v1440 = vpack.c.b16 %v1410, %v1409
    %v1441 = vpack.c.b16 %v1412, %v1411
    %v1442 = vpack.c.b16 %v1414, %v1413
    %v1443 = vpack.c.b16 %v1416, %v1415
    %v1444 = vpack.c.b16 %v1418, %v1417
    %v1445 = vpack.c.b16 %v1420, %v1419
    %v1446 = vpack.c.b16 %v1422, %v1421
    %v1447 = vpack.c.b16 %v1424, %v1423
    %v1448 = vpack.c.b16 %v1426, %v1425
    %v1449 = vpack.c.b16 %v1428, %v1427
    %v1450 = vpack.c.b16 %v1430, %v1429
    %v1451 = vpack.c.b16 %v1432, %v1431
    %v1452 = vpack.c.b16 %v1434, %v1433
    %v1453 = vpack.c.b16 %v1436, %v1435
    %v1454 = vpack.c.b16 %v1438, %v1437
    %1471 = vmatprep.subr.bf16.mxu0 0
    %1472 = vmatpush1.bf16.msra.mxu0 %v1439
    %1473 = vmatprep.subr.bf16.mxu0 0
    %1474 = vmatpush1.bf16.msra.mxu0 %v1440
    %1475 = vmatprep.subr.bf16.mxu0 0
    %1476 = vmatpush1.bf16.msra.mxu0 %v1441
    %1477 = vmatprep.subr.bf16.mxu0 0
    %1478 = vmatpush1.bf16.msra.mxu0 %v1442
    %1479 = vmatprep.subr.bf16.mxu0 0
    %1480 = vmatpush1.bf16.msra.mxu0 %v1443
    %1481 = vmatprep.subr.bf16.mxu0 0
    %1482 = vmatpush1.bf16.msra.mxu0 %v1444
    %1483 = vmatprep.subr.bf16.mxu0 0
    %1484 = vmatpush1.bf16.msra.mxu0 %v1445
    %1485 = vmatprep.subr.bf16.mxu0 0
    %1486 = vmatpush1.bf16.msra.mxu0 %v1446
    %1487 = vmatprep.subr.bf16.mxu0 0
    %1488 = vmatpush1.bf16.msra.mxu0 %v1447
    %1489 = vmatprep.subr.bf16.mxu0 0
    %1490 = vmatpush1.bf16.msra.mxu0 %v1448
    %1491 = vmatprep.subr.bf16.mxu0 0
    %1492 = vmatpush1.bf16.msra.mxu0 %v1449
    %1493 = vmatprep.subr.bf16.mxu0 0
    %1494 = vmatpush1.bf16.msra.mxu0 %v1450
    %1495 = vmatprep.subr.bf16.mxu0 0
    %1496 = vmatpush1.bf16.msra.mxu0 %v1451
    %1497 = vmatprep.subr.bf16.mxu0 0
    %1498 = vmatpush1.bf16.msra.mxu0 %v1452
    %1499 = vmatprep.subr.bf16.mxu0 0
    %1500 = vmatpush1.bf16.msra.mxu0 %v1453
    %1501 = vmatprep.subr.bf16.mxu0 0
    %1502 = vmatpush1.bf16.msra.mxu0 %v1454
    %1503 = vmatprep.mubr.bf16.mxu0 %v1370
    %1504 = vmatmul.mubr.bf16.gmra.mrb[0].mxu0 %v1369
    %v1505 = vpop.f32.mrb[0].mxu0
    %v1506 = vadd.f32 %v1374, %v1505
    %v1507 = vpop.f32.mrb[0].mxu0
    %v1508 = vpop.f32.mrb[0].mxu0
    %v1509 = vpop.f32.mrb[0].mxu0
    %1510 = vdwg.mxu0
    %v1511 = vsub.f32 %v872, %v888
    %v1512 = vmul.f32 %v1506, %v1511
    %v1513 = vsel %vm876, %v1512, 0.0
    %1514 = vadd.xlane.f32.xlu0 %v1513
    %v1515 = vpop.xlane.xlu0 %1514
    %v1516 = vmul.f32 %v744, 0.25
    %v1517 = vsub.f32 %v744, %v1516
    %v1518 = vadd.f32 %v1517, %v1515
    %v1519 = vsub.f32 %v873, %v888
    %1521 = vrot.lane.b32.xlu0 %v1519, 32
    %v1522 = vpop.permute.xlu0 %1521
    %v1524 = vmul.f32 %v1506, %v1522
    %1526 = vrot.lane.b32.xlu0 %v1524, 96
    %v1527 = vpop.permute.xlu0 %1526
    %v1529 = vsel %vm876, %v1527, 0.0
    %1530 = vadd.xlane.f32.xlu0 %v1529
    %v1531 = vpop.xlane.xlu0 %1530
    %v1532 = vmul.f32 %v1518, 0.25
    %v1533 = vsub.f32 %v1518, %v1532
    %v1534 = vadd.f32 %v1533, %v1531
    %v1535 = vsub.f32 %v874, %v888
    %1537 = vrot.lane.b32.xlu0 %v1535, 64
    %v1538 = vpop.permute.xlu0 %1537
    %v1540 = vmul.f32 %v1506, %v1538
    %1542 = vrot.lane.b32.xlu0 %v1540, 64
    %v1543 = vpop.permute.xlu0 %1542
    %v1545 = vsel %vm876, %v1543, 0.0
    %1546 = vadd.xlane.f32.xlu0 %v1545
    %v1547 = vpop.xlane.xlu0 %1546
    %v1548 = vmul.f32 %v1534, 0.25
    %v1549 = vsub.f32 %v1534, %v1548
    %v1550 = vadd.f32 %v1549, %v1547
    %v1551 = vsub.f32 %v875, %v888
    %1553 = vrot.lane.b32.xlu0 %v1551, 96
    %v1554 = vpop.permute.xlu0 %1553
    %v1556 = vmul.f32 %v1506, %v1554
    %1558 = vrot.lane.b32.xlu0 %v1556, 32
    %v1559 = vpop.permute.xlu0 %1558
    %v1561 = vsel %vm876, %v1559, 0.0
    %1562 = vadd.xlane.f32.xlu0 %v1561
    %v1563 = vpop.xlane.xlu0 %1562
    %v1564 = vmul.f32 %v1550, 0.25
    %v1565 = vsub.f32 %v1550, %v1564
    %v1566 = vadd.f32 %v1565, %v1563
    %v1567 = vmul.f32 %v132, %v132
    %1569 = vrot.lane.b32.xlu0 %v1567, 124
    %v1570 = vpop.permute.xlu0 %1569
    %v1572 = vsel %vm803, %v1570, 0.0
    %1573 = vadd.xlane.f32.xlu0 %v1572
    %v1574 = vpop.xlane.xlu0 %1573
    %v1575 = vlaneseq
    %v1576 = vand.u32 %v1575, 127
    %vm1577 = vcmp.eq.s32.totalorder %v1576, 0
    %vm1578 = vcmp.eq.s32.totalorder %v1576, 1
    %v1579 = vsel %vm1578, %v1574, 0.0
    %1581 = vset.pattern.permute.xlu0 32
    %1582 = vperm.xlu0 %1581, %v1566
    %v1583 = vpop.permute.xlu0 %1582
    %v1585 = vsel %vm1577, %v1583, %v1579
    %1586 = vst [vmem:[%s3] sm:$0xff] %v1585
    // Predicated region
    $region18: #{bsdeg_forward.1} parent=1 // pred_check
      _
    $region19: #{bsdeg_forward.1} parent=1 // pred_check_branch
      %1588 = sbr.rel (0) target = $region21
    $region20: #{bsdeg_forward.1} parent=1 // pred_region
      _
    $region21: #{bsdeg_forward.1} parent=1 // pred_fallthru
      _
    // Predicated region
    $region22: #{bsdeg_forward.1} parent=1 // pred_check
      _
    $region23: #{bsdeg_forward.1} parent=1 // pred_check_branch
      %1590 = sbr.rel (0) target = $region25
    $region24: #{bsdeg_forward.1} parent=1 // pred_region
      _
    $region25: #{bsdeg_forward.1} parent=1 // pred_fallthru
      _
    %1591 = vsyncpa [#allocation3], 1

</llo_original>
